<compile_context>
chip_gen: v6e
topology: v6e:2x2x1
jax: 0.10.0
libtpu: 0.0.40
codegen_flags: <defaults>
</compile_context>

<pallas_src>
import math
import functools

import jax
import jax.numpy as jnp
import numpy as np
from jax import lax
from jax.experimental import pallas as pl
from jax.experimental.pallas import tpu as pltpu

# ---- module config (from the PyTorch __init__ / tcnn encoding_config) ----------
N_LEVELS = 16
N_FEATURES = 2
LOG2_HASHMAP_SIZE = 19
HASHMAP_SIZE = 1 << LOG2_HASHMAP_SIZE          # 524288 entries per level
BASE_RESOLUTION = 16
PER_LEVEL_SCALE = 1.3819129
N_INPUT_DIMS = 3
INCLUDE_XYZ = True
XYZ_SCALE = 2.0
XYZ_OFFSET = -1.0

LANES = 128
ENTRIES_PER_ROW = LANES // N_FEATURES          # 64 entries (2 feats each) per 128-lane row
ROW_SHIFT = int(math.log2(ENTRIES_PER_ROW))    # 6
TABLE_ROWS = HASHMAP_SIZE // ENTRIES_PER_ROW   # 8192 rows per level
TILE = 256                                     # points per grid step (multiple of 128)
N_CORNERS = 1 << N_INPUT_DIMS                  # 8 trilinear corners
PRIMES = (1, 2654435761, 805459861)            # tcnn coherent prime hash


def level_params():
    """Per-level scale / resolution / use-hash flag (tcnn conventions)."""
    scales, ress, hashed = [], [], []
    for l in range(N_LEVELS):
        s = BASE_RESOLUTION * (PER_LEVEL_SCALE ** l) - 1.0
        r = int(math.ceil(s)) + 1
        scales.append(s)
        ress.append(r)
        hashed.append(1 if r ** N_INPUT_DIMS > HASHMAP_SIZE else 0)
    return (jnp.array(scales, jnp.float32),
            jnp.array(ress, jnp.int32),
            jnp.array(hashed, jnp.int32))


# ---- Pallas kernel --------------------------------------------------------------
def hashgrid_kernel(scale_ref, res_ref, hashed_ref, xyz_ref, tab_ref, out_ref,
                    acc_ref, idx_vmem_ref, w_vmem_ref, idx_smem_ref, w_smem_ref,
                    sem_ref):
    """One grid step = (one resolution level, one tile of TILE points).

    scale_ref/res_ref/hashed_ref : SMEM (n_levels,) per-level params
    xyz_ref  : VMEM (3, TILE)   transposed, lane-dense coordinates
    tab_ref  : VMEM (1, TABLE_ROWS, 128)  this level's hash table (feature-interleaved)
    out_ref  : VMEM (1, TILE, N_FEATURES) interpolated features (points in sublanes)
    acc_ref  : VMEM (TILE, 128) per-point weighted-corner accumulator
    idx_vmem_ref / idx_smem_ref : (8, TILE) int32 corner entry indices (VMEM -> SMEM)
    w_vmem_ref   / w_smem_ref   : (8, TILE) f32   trilinear weights      (VMEM -> SMEM)
    sem_ref  : (2,) DMA semaphores for the two staging copies
    """
    lvl = pl.program_id(0)
    scale = scale_ref[lvl]                         # f32 scalar
    res_u = res_ref[lvl].astype(jnp.uint32)        # u32 scalar
    use_hash = hashed_ref[lvl]                     # i32 scalar (0/1)

    # ---- phase 1: vectorized corner index / weight math on the VPU --------------
    xyz = xyz_ref[...]                             # (3, TILE) f32
    pos = xyz * scale + 0.5                        # tcnn convention
    pos_floor = jnp.floor(pos)
    grid_i = pos_floor.astype(jnp.int32)           # (3, TILE)
    frac = pos - pos_floor                         # (3, TILE)

    g0 = [grid_i[d:d + 1, :] for d in range(N_INPUT_DIMS)]   # (1, TILE) each
    fr = [frac[d:d + 1, :] for d in range(N_INPUT_DIMS)]

    idx_parts, w_parts = [], []
    for c in range(N_CORNERS):                     # 8 corners, static unroll
        w = None
        coord_u = []
        for d in range(N_INPUT_DIMS):
            bit = (c >> d) & 1
            coord_u.append((g0[d] + bit).astype(jnp.uint32))
            wd = fr[d] if bit else (1.0 - fr[d])
            w = wd if w is None else w * wd
        # hashed index (fine levels): coherent prime hash in u32 (well-defined wrap)
        hashed_idx = (coord_u[0] * jnp.uint32(PRIMES[0])
                      ^ coord_u[1] * jnp.uint32(PRIMES[1])
                      ^ coord_u[2] * jnp.uint32(PRIMES[2]))
        # dense index (coarse levels): x + y*res + z*res^2 (u32, no signed overflow)
        dense_idx = coord_u[0] + coord_u[1] * res_u + coord_u[2] * (res_u * res_u)
        idx = jnp.where(use_hash == 1, hashed_idx, dense_idx) & jnp.uint32(HASHMAP_SIZE - 1)
        idx_parts.append(idx.astype(jnp.int32))
        w_parts.append(w)

    idx_all = jnp.concatenate(idx_parts, axis=0)   # (8, TILE) int32 entry indices
    w_all = jnp.concatenate(w_parts, axis=0)       # (8, TILE) f32 trilinear weights

    # Stage indices + weights into SMEM so the gather loop can read them as scalars.
    idx_vmem_ref[...] = idx_all
    w_vmem_ref[...] = w_all
    idx_copy = pltpu.make_async_copy(idx_vmem_ref, idx_smem_ref, sem_ref.at[0])
    w_copy = pltpu.make_async_copy(w_vmem_ref, w_smem_ref, sem_ref.at[1])
    idx_copy.start()
    w_copy.start()
    idx_copy.wait()
    w_copy.wait()

    # ---- phase 2: per-point gather + weighted accumulate (scalar-indexed loads) -
    ent_per_lane = lax.broadcasted_iota(jnp.int32, (1, LANES), 1) >> 1   # lane -> entry

    def gather_body(p, carry):
        acc = jnp.zeros((1, LANES), jnp.float32)
        for c in range(N_CORNERS):
            e = idx_smem_ref[c, p]                    # scalar entry index
            w = w_smem_ref[c, p]                      # scalar trilinear weight
            row = e >> ROW_SHIFT                      # shift/mask, no div/mod
            ent = e & (ENTRIES_PER_ROW - 1)
            trow = tab_ref[0, pl.ds(row, 1), :]       # (1, 128) dynamic row load
            acc = acc + jnp.where(ent_per_lane == ent, trow * w, 0.0)
        acc_ref[pl.ds(p, 1), :] = acc                 # one store per point
        return carry

    lax.fori_loop(0, TILE, gather_body, 0)

    # ---- phase 3: vectorized even/odd feature-lane split + store ----------------
    g = acc_ref[...]                                          # (TILE, 128)
    lane_ids = lax.broadcasted_iota(jnp.int32, (1, LANES), 1)
    s_all = jnp.sum(g, axis=1, keepdims=True)                 # (TILE, 1): f0 + f1
    s_f0 = jnp.sum(jnp.where((lane_ids & 1) == 0, g, 0.0),
                   axis=1, keepdims=True)                     # (TILE, 1): f0
    out_ref[0] = jnp.concatenate([s_f0, s_all - s_f0], axis=1)   # (TILE, 2)


# ---- wrapper --------------------------------------------------------------------
@functools.partial(jax.jit, static_argnames=("include_xyz",))
def hash_grid_encode(xyz, table, scales, ress, hashed, include_xyz=INCLUDE_XYZ):
    n_pts = xyz.shape[0]
    xyz = xyz.astype(jnp.float32)
    n_pad = ((n_pts + TILE - 1) // TILE) * TILE

    # transposed, lane-dense, padded coordinates
    xyz_t = jnp.zeros((N_INPUT_DIMS, n_pad), jnp.float32).at[:, :n_pts].set(xyz.T)

    feats = pl.pallas_call(
        hashgrid_kernel,
        out_shape=jax.ShapeDtypeStruct((N_LEVELS, n_pad, N_FEATURES), jnp.float32),
        grid_spec=pltpu.PrefetchScalarGridSpec(
            num_scalar_prefetch=0,
            grid=(N_LEVELS, n_pad // TILE),                  # level OUTER, point-tile INNER
            in_specs=[
                pl.BlockSpec(memory_space=pltpu.MemorySpace.SMEM),   # scales  (16,)
                pl.BlockSpec(memory_space=pltpu.MemorySpace.SMEM),   # res     (16,)
                pl.BlockSpec(memory_space=pltpu.MemorySpace.SMEM),   # hashed  (16,)
                pl.BlockSpec((N_INPUT_DIMS, TILE), lambda l, t: (0, t)),        # xyz tile
                pl.BlockSpec((1, TABLE_ROWS, LANES), lambda l, t: (l, 0, 0)),   # level table
            ],
            out_specs=pl.BlockSpec((1, TILE, N_FEATURES), lambda l, t: (l, t, 0)),
            scratch_shapes=[
                pltpu.VMEM((TILE, LANES), jnp.float32),      # per-point accumulator
                pltpu.VMEM((N_CORNERS, TILE), jnp.int32),    # idx staging (VMEM)
                pltpu.VMEM((N_CORNERS, TILE), jnp.float32),  # weight staging (VMEM)
                pltpu.SMEM((N_CORNERS, TILE), jnp.int32),    # idx scalars (SMEM)
                pltpu.SMEM((N_CORNERS, TILE), jnp.float32),  # weight scalars (SMEM)
                pltpu.SemaphoreType.DMA((2,)),               # staging DMA semaphores
            ],
        ),
        compiler_params=pltpu.CompilerParams(
            dimension_semantics=("parallel", "arbitrary"),
            vmem_limit_bytes=32 * 1024 * 1024,
        ),
    )(scales, ress, hashed, xyz_t, table)

    # (L, n_pad, F) -> (n_pts, L*F) level-major (tcnn output ordering)
    enc = feats[:, :n_pts, :].transpose(1, 0, 2).reshape(n_pts, N_LEVELS * N_FEATURES)
    if include_xyz:
        enc = jnp.concatenate([xyz * XYZ_SCALE + XYZ_OFFSET, enc], axis=-1)
    return enc


# ---- pure-JAX reference (for correctness check) ----------------------------------
def hash_grid_encode_ref(xyz, params, scales, ress, hashed, include_xyz=INCLUDE_XYZ):
    xyz = xyz.astype(jnp.float32)
    n = xyz.shape[0]
    pos = xyz[None, :, :] * scales[:, None, None] + 0.5      # (L, n, 3)
    pos_floor = jnp.floor(pos)
    grid_i = pos_floor.astype(jnp.int32)
    frac = pos - pos_floor
    res_u = ress.astype(jnp.uint32)[:, None]
    acc = jnp.zeros((N_LEVELS, n, N_FEATURES), jnp.float32)
    for c in range(N_CORNERS):
        bits = jnp.array([(c >> d) & 1 for d in range(N_INPUT_DIMS)], jnp.int32)
        coord = (grid_i + bits[None, None, :]).astype(jnp.uint32)    # (L, n, 3)
        w = jnp.prod(jnp.where(bits[None, None, :] == 1, frac, 1.0 - frac), axis=-1)
        h = (coord[..., 0] * jnp.uint32(PRIMES[0])
             ^ coord[..., 1] * jnp.uint32(PRIMES[1])
             ^ coord[..., 2] * jnp.uint32(PRIMES[2]))
        dense = coord[..., 0] + coord[..., 1] * res_u + coord[..., 2] * res_u * res_u
        idx = (jnp.where(hashed[:, None] == 1, h, dense)
               & jnp.uint32(HASHMAP_SIZE - 1)).astype(jnp.int32)
        vals = jax.vmap(lambda tbl, ind: tbl[ind])(params, idx)      # (L, n, F)
        acc = acc + w[..., None] * vals
    enc = acc.transpose(1, 0, 2).reshape(n, N_LEVELS * N_FEATURES)
    if include_xyz:
        enc = jnp.concatenate([xyz * XYZ_SCALE + XYZ_OFFSET, enc], axis=-1)
    return enc


if __name__ == "__main__":
    key = jax.random.PRNGKey(0)
    k_xyz, k_tab = jax.random.split(key)

    n_pts = 64
    xyz = jax.random.uniform(k_xyz, (n_pts, N_INPUT_DIMS), jnp.float32)  # in [0, 1)

    # tcnn initializes hash-table params ~ U(-1e-4, 1e-4); deterministic synthetic init.
    params = jax.random.uniform(k_tab, (N_LEVELS, HASHMAP_SIZE, N_FEATURES),
                                jnp.float32, minval=-1e-4, maxval=1e-4)
    # feature-interleaved lane-dense layout used by the kernel
    table = params.reshape(N_LEVELS, TABLE_ROWS, LANES)

    scales, ress, hashed = level_params()

    out = hash_grid_encode(xyz, table, scales, ress, hashed, include_xyz=INCLUDE_XYZ)
    out = jax.block_until_ready(out)

    expected_dims = N_LEVELS * N_FEATURES + (N_INPUT_DIMS if INCLUDE_XYZ else 0)
    assert out.shape == (n_pts, expected_dims), out.shape
    assert out.dtype == jnp.float32

    ref = hash_grid_encode_ref(xyz, params, scales, ress, hashed, include_xyz=INCLUDE_XYZ)
    np.testing.assert_allclose(np.asarray(out), np.asarray(ref), rtol=1e-5, atol=1e-7)

    print("KERNEL_OK")
</pallas_src>

<mosaic_0001>
module attributes {stable_mosaic.version = 11 : i64} {
  func.func @hashgrid_kernel(%arg0: i32, %arg1: i32, %arg2: memref<16xf32, #tpu.memory_space<smem>>, %arg3: memref<16xi32, #tpu.memory_space<smem>>, %arg4: memref<16xi32, #tpu.memory_space<smem>>, %arg5: memref<3x256xf32, #tpu.memory_space<vmem>>, %arg6: memref<1x8192x128xf32, #tpu.memory_space<vmem>>, %arg7: memref<1x256x2xf32, #tpu.memory_space<vmem>>, %arg8: memref<256x128xf32, #tpu.memory_space<vmem>>, %arg9: memref<8x256xi32, #tpu.memory_space<vmem>>, %arg10: memref<8x256xf32, #tpu.memory_space<vmem>>, %arg11: memref<8x256xi32, #tpu.memory_space<smem>>, %arg12: memref<8x256xf32, #tpu.memory_space<smem>>, %arg13: memref<2x!tpu.dma_semaphore, #tpu.memory_space<semaphore_mem>>) attributes {dimension_semantics = [#tpu.dimension_semantics<parallel>, #tpu.dimension_semantics<arbitrary>], iteration_bounds = array<i64: 16, 1>, scalar_prefetch = 0 : i64, scratch_operands = 6 : i64, tpu.core_type = #tpu.core_type<tc>, window_params = [{transform_indices = @transform_0, window_bounds = array<i64: 16>}, {transform_indices = @transform_1, window_bounds = array<i64: 16>}, {transform_indices = @transform_2, window_bounds = array<i64: 16>}, {transform_indices = @transform_3, window_bounds = array<i64: 3, 256>}, {transform_indices = @transform_4, window_bounds = array<i64: 1, 8192, 128>}, {transform_indices = @transform_5, window_bounds = array<i64: 1, 256, 2>}]} {
    %0 = arith.index_cast %arg0 : i32 to index
    %1 = memref.load %arg2[%0] : memref<16xf32, #tpu.memory_space<smem>>
    %2 = arith.index_cast %arg0 : i32 to index
    %3 = memref.load %arg3[%2] : memref<16xi32, #tpu.memory_space<smem>>
    %4 = arith.index_cast %arg0 : i32 to index
    %5 = memref.load %arg4[%4] : memref<16xi32, #tpu.memory_space<smem>>
    %c0 = arith.constant 0 : index
    %c0_0 = arith.constant 0 : index
    %6 = vector.load %arg5[%c0, %c0_0] : memref<3x256xf32, #tpu.memory_space<vmem>>, vector<3x256xf32>
    %7 = vector.broadcast %1 : f32 to vector<3x256xf32>
    %8 = arith.mulf %6, %7 : vector<3x256xf32>
    %cst = arith.constant 5.000000e-01 : f32
    %9 = vector.broadcast %cst : f32 to vector<3x256xf32>
    %10 = arith.addf %8, %9 : vector<3x256xf32>
    %11 = math.floor %10 : vector<3x256xf32>
    %12 = arith.fptosi %11 : vector<3x256xf32> to vector<3x256xi32>
    %13 = arith.subf %10, %11 : vector<3x256xf32>
    %14 = vector.extract_strided_slice %12 {offsets = [0, 0], sizes = [1, 256], strides = [1, 1]} : vector<3x256xi32> to vector<1x256xi32>
    %15 = vector.extract_strided_slice %12 {offsets = [1, 0], sizes = [1, 256], strides = [1, 1]} : vector<3x256xi32> to vector<1x256xi32>
    %16 = vector.extract_strided_slice %12 {offsets = [2, 0], sizes = [1, 256], strides = [1, 1]} : vector<3x256xi32> to vector<1x256xi32>
    %17 = vector.extract_strided_slice %13 {offsets = [0, 0], sizes = [1, 256], strides = [1, 1]} : vector<3x256xf32> to vector<1x256xf32>
    %18 = vector.extract_strided_slice %13 {offsets = [1, 0], sizes = [1, 256], strides = [1, 1]} : vector<3x256xf32> to vector<1x256xf32>
    %19 = vector.extract_strided_slice %13 {offsets = [2, 0], sizes = [1, 256], strides = [1, 1]} : vector<3x256xf32> to vector<1x256xf32>
    %c0_i32 = arith.constant 0 : i32
    %20 = vector.broadcast %c0_i32 : i32 to vector<1x256xi32>
    %21 = arith.addi %14, %20 : vector<1x256xi32>
    %cst_1 = arith.constant 1.000000e+00 : f32
    %22 = vector.broadcast %cst_1 : f32 to vector<1x256xf32>
    %23 = arith.subf %22, %17 : vector<1x256xf32>
    %c0_i32_2 = arith.constant 0 : i32
    %24 = vector.broadcast %c0_i32_2 : i32 to vector<1x256xi32>
    %25 = arith.addi %15, %24 : vector<1x256xi32>
    %cst_3 = arith.constant 1.000000e+00 : f32
    %26 = vector.broadcast %cst_3 : f32 to vector<1x256xf32>
    %27 = arith.subf %26, %18 : vector<1x256xf32>
    %28 = arith.mulf %23, %27 : vector<1x256xf32>
    %c0_i32_4 = arith.constant 0 : i32
    %29 = vector.broadcast %c0_i32_4 : i32 to vector<1x256xi32>
    %30 = arith.addi %16, %29 : vector<1x256xi32>
    %cst_5 = arith.constant 1.000000e+00 : f32
    %31 = vector.broadcast %cst_5 : f32 to vector<1x256xf32>
    %32 = arith.subf %31, %19 : vector<1x256xf32>
    %33 = arith.mulf %28, %32 : vector<1x256xf32>
    %c1_i32 = arith.constant 1 : i32
    %34 = vector.broadcast %c1_i32 : i32 to vector<1x256xi32>
    %35 = arith.muli %21, %34 : vector<1x256xi32>
    %c-1640531535_i32 = arith.constant -1640531535 : i32
    %36 = vector.broadcast %c-1640531535_i32 : i32 to vector<1x256xi32>
    %37 = arith.muli %25, %36 : vector<1x256xi32>
    %38 = arith.xori %35, %37 : vector<1x256xi32>
    %c805459861_i32 = arith.constant 805459861 : i32
    %39 = vector.broadcast %c805459861_i32 : i32 to vector<1x256xi32>
    %40 = arith.muli %30, %39 : vector<1x256xi32>
    %41 = arith.xori %38, %40 : vector<1x256xi32>
    %42 = vector.broadcast %3 : i32 to vector<1x256xi32>
    %43 = arith.muli %25, %42 : vector<1x256xi32>
    %44 = arith.addi %21, %43 : vector<1x256xi32>
    %45 = arith.muli %3, %3 : i32
    %46 = vector.broadcast %45 : i32 to vector<1x256xi32>
    %47 = arith.muli %30, %46 : vector<1x256xi32>
    %48 = arith.addi %44, %47 : vector<1x256xi32>
    %c1_i32_6 = arith.constant 1 : i32
    %49 = arith.cmpi eq, %5, %c1_i32_6 : i32
    %50 = arith.select %49, %41, %48 : vector<1x256xi32>
    %c524287_i32 = arith.constant 524287 : i32
    %51 = vector.broadcast %c524287_i32 : i32 to vector<1x256xi32>
    %52 = arith.andi %50, %51 : vector<1x256xi32>
    %c1_i32_7 = arith.constant 1 : i32
    %53 = vector.broadcast %c1_i32_7 : i32 to vector<1x256xi32>
    %54 = arith.addi %14, %53 : vector<1x256xi32>
    %c0_i32_8 = arith.constant 0 : i32
    %55 = vector.broadcast %c0_i32_8 : i32 to vector<1x256xi32>
    %56 = arith.addi %15, %55 : vector<1x256xi32>
    %cst_9 = arith.constant 1.000000e+00 : f32
    %57 = vector.broadcast %cst_9 : f32 to vector<1x256xf32>
    %58 = arith.subf %57, %18 : vector<1x256xf32>
    %59 = arith.mulf %17, %58 : vector<1x256xf32>
    %c0_i32_10 = arith.constant 0 : i32
    %60 = vector.broadcast %c0_i32_10 : i32 to vector<1x256xi32>
    %61 = arith.addi %16, %60 : vector<1x256xi32>
    %cst_11 = arith.constant 1.000000e+00 : f32
    %62 = vector.broadcast %cst_11 : f32 to vector<1x256xf32>
    %63 = arith.subf %62, %19 : vector<1x256xf32>
    %64 = arith.mulf %59, %63 : vector<1x256xf32>
    %c1_i32_12 = arith.constant 1 : i32
    %65 = vector.broadcast %c1_i32_12 : i32 to vector<1x256xi32>
    %66 = arith.muli %54, %65 : vector<1x256xi32>
    %c-1640531535_i32_13 = arith.constant -1640531535 : i32
    %67 = vector.broadcast %c-1640531535_i32_13 : i32 to vector<1x256xi32>
    %68 = arith.muli %56, %67 : vector<1x256xi32>
    %69 = arith.xori %66, %68 : vector<1x256xi32>
    %c805459861_i32_14 = arith.constant 805459861 : i32
    %70 = vector.broadcast %c805459861_i32_14 : i32 to vector<1x256xi32>
    %71 = arith.muli %61, %70 : vector<1x256xi32>
    %72 = arith.xori %69, %71 : vector<1x256xi32>
    %73 = vector.broadcast %3 : i32 to vector<1x256xi32>
    %74 = arith.muli %56, %73 : vector<1x256xi32>
    %75 = arith.addi %54, %74 : vector<1x256xi32>
    %76 = arith.muli %3, %3 : i32
    %77 = vector.broadcast %76 : i32 to vector<1x256xi32>
    %78 = arith.muli %61, %77 : vector<1x256xi32>
    %79 = arith.addi %75, %78 : vector<1x256xi32>
    %c1_i32_15 = arith.constant 1 : i32
    %80 = arith.cmpi eq, %5, %c1_i32_15 : i32
    %81 = arith.select %80, %72, %79 : vector<1x256xi32>
    %c524287_i32_16 = arith.constant 524287 : i32
    %82 = vector.broadcast %c524287_i32_16 : i32 to vector<1x256xi32>
    %83 = arith.andi %81, %82 : vector<1x256xi32>
    %c0_i32_17 = arith.constant 0 : i32
    %84 = vector.broadcast %c0_i32_17 : i32 to vector<1x256xi32>
    %85 = arith.addi %14, %84 : vector<1x256xi32>
    %cst_18 = arith.constant 1.000000e+00 : f32
    %86 = vector.broadcast %cst_18 : f32 to vector<1x256xf32>
    %87 = arith.subf %86, %17 : vector<1x256xf32>
    %c1_i32_19 = arith.constant 1 : i32
    %88 = vector.broadcast %c1_i32_19 : i32 to vector<1x256xi32>
    %89 = arith.addi %15, %88 : vector<1x256xi32>
    %90 = arith.mulf %87, %18 : vector<1x256xf32>
    %c0_i32_20 = arith.constant 0 : i32
    %91 = vector.broadcast %c0_i32_20 : i32 to vector<1x256xi32>
    %92 = arith.addi %16, %91 : vector<1x256xi32>
    %cst_21 = arith.constant 1.000000e+00 : f32
    %93 = vector.broadcast %cst_21 : f32 to vector<1x256xf32>
    %94 = arith.subf %93, %19 : vector<1x256xf32>
    %95 = arith.mulf %90, %94 : vector<1x256xf32>
    %c1_i32_22 = arith.constant 1 : i32
    %96 = vector.broadcast %c1_i32_22 : i32 to vector<1x256xi32>
    %97 = arith.muli %85, %96 : vector<1x256xi32>
    %c-1640531535_i32_23 = arith.constant -1640531535 : i32
    %98 = vector.broadcast %c-1640531535_i32_23 : i32 to vector<1x256xi32>
    %99 = arith.muli %89, %98 : vector<1x256xi32>
    %100 = arith.xori %97, %99 : vector<1x256xi32>
    %c805459861_i32_24 = arith.constant 805459861 : i32
    %101 = vector.broadcast %c805459861_i32_24 : i32 to vector<1x256xi32>
    %102 = arith.muli %92, %101 : vector<1x256xi32>
    %103 = arith.xori %100, %102 : vector<1x256xi32>
    %104 = vector.broadcast %3 : i32 to vector<1x256xi32>
    %105 = arith.muli %89, %104 : vector<1x256xi32>
    %106 = arith.addi %85, %105 : vector<1x256xi32>
    %107 = arith.muli %3, %3 : i32
    %108 = vector.broadcast %107 : i32 to vector<1x256xi32>
    %109 = arith.muli %92, %108 : vector<1x256xi32>
    %110 = arith.addi %106, %109 : vector<1x256xi32>
    %c1_i32_25 = arith.constant 1 : i32
    %111 = arith.cmpi eq, %5, %c1_i32_25 : i32
    %112 = arith.select %111, %103, %110 : vector<1x256xi32>
    %c524287_i32_26 = arith.constant 524287 : i32
    %113 = vector.broadcast %c524287_i32_26 : i32 to vector<1x256xi32>
    %114 = arith.andi %112, %113 : vector<1x256xi32>
    %c1_i32_27 = arith.constant 1 : i32
    %115 = vector.broadcast %c1_i32_27 : i32 to vector<1x256xi32>
    %116 = arith.addi %14, %115 : vector<1x256xi32>
    %c1_i32_28 = arith.constant 1 : i32
    %117 = vector.broadcast %c1_i32_28 : i32 to vector<1x256xi32>
    %118 = arith.addi %15, %117 : vector<1x256xi32>
    %119 = arith.mulf %17, %18 : vector<1x256xf32>
    %c0_i32_29 = arith.constant 0 : i32
    %120 = vector.broadcast %c0_i32_29 : i32 to vector<1x256xi32>
    %121 = arith.addi %16, %120 : vector<1x256xi32>
    %cst_30 = arith.constant 1.000000e+00 : f32
    %122 = vector.broadcast %cst_30 : f32 to vector<1x256xf32>
    %123 = arith.subf %122, %19 : vector<1x256xf32>
    %124 = arith.mulf %119, %123 : vector<1x256xf32>
    %c1_i32_31 = arith.constant 1 : i32
    %125 = vector.broadcast %c1_i32_31 : i32 to vector<1x256xi32>
    %126 = arith.muli %116, %125 : vector<1x256xi32>
    %c-1640531535_i32_32 = arith.constant -1640531535 : i32
    %127 = vector.broadcast %c-1640531535_i32_32 : i32 to vector<1x256xi32>
    %128 = arith.muli %118, %127 : vector<1x256xi32>
    %129 = arith.xori %126, %128 : vector<1x256xi32>
    %c805459861_i32_33 = arith.constant 805459861 : i32
    %130 = vector.broadcast %c805459861_i32_33 : i32 to vector<1x256xi32>
    %131 = arith.muli %121, %130 : vector<1x256xi32>
    %132 = arith.xori %129, %131 : vector<1x256xi32>
    %133 = vector.broadcast %3 : i32 to vector<1x256xi32>
    %134 = arith.muli %118, %133 : vector<1x256xi32>
    %135 = arith.addi %116, %134 : vector<1x256xi32>
    %136 = arith.muli %3, %3 : i32
    %137 = vector.broadcast %136 : i32 to vector<1x256xi32>
    %138 = arith.muli %121, %137 : vector<1x256xi32>
    %139 = arith.addi %135, %138 : vector<1x256xi32>
    %c1_i32_34 = arith.constant 1 : i32
    %140 = arith.cmpi eq, %5, %c1_i32_34 : i32
    %141 = arith.select %140, %132, %139 : vector<1x256xi32>
    %c524287_i32_35 = arith.constant 524287 : i32
    %142 = vector.broadcast %c524287_i32_35 : i32 to vector<1x256xi32>
    %143 = arith.andi %141, %142 : vector<1x256xi32>
    %c0_i32_36 = arith.constant 0 : i32
    %144 = vector.broadcast %c0_i32_36 : i32 to vector<1x256xi32>
    %145 = arith.addi %14, %144 : vector<1x256xi32>
    %cst_37 = arith.constant 1.000000e+00 : f32
    %146 = vector.broadcast %cst_37 : f32 to vector<1x256xf32>
    %147 = arith.subf %146, %17 : vector<1x256xf32>
    %c0_i32_38 = arith.constant 0 : i32
    %148 = vector.broadcast %c0_i32_38 : i32 to vector<1x256xi32>
    %149 = arith.addi %15, %148 : vector<1x256xi32>
    %cst_39 = arith.constant 1.000000e+00 : f32
    %150 = vector.broadcast %cst_39 : f32 to vector<1x256xf32>
    %151 = arith.subf %150, %18 : vector<1x256xf32>
    %152 = arith.mulf %147, %151 : vector<1x256xf32>
    %c1_i32_40 = arith.constant 1 : i32
    %153 = vector.broadcast %c1_i32_40 : i32 to vector<1x256xi32>
    %154 = arith.addi %16, %153 : vector<1x256xi32>
    %155 = arith.mulf %152, %19 : vector<1x256xf32>
    %c1_i32_41 = arith.constant 1 : i32
    %156 = vector.broadcast %c1_i32_41 : i32 to vector<1x256xi32>
    %157 = arith.muli %145, %156 : vector<1x256xi32>
    %c-1640531535_i32_42 = arith.constant -1640531535 : i32
    %158 = vector.broadcast %c-1640531535_i32_42 : i32 to vector<1x256xi32>
    %159 = arith.muli %149, %158 : vector<1x256xi32>
    %160 = arith.xori %157, %159 : vector<1x256xi32>
    %c805459861_i32_43 = arith.constant 805459861 : i32
    %161 = vector.broadcast %c805459861_i32_43 : i32 to vector<1x256xi32>
    %162 = arith.muli %154, %161 : vector<1x256xi32>
    %163 = arith.xori %160, %162 : vector<1x256xi32>
    %164 = vector.broadcast %3 : i32 to vector<1x256xi32>
    %165 = arith.muli %149, %164 : vector<1x256xi32>
    %166 = arith.addi %145, %165 : vector<1x256xi32>
    %167 = arith.muli %3, %3 : i32
    %168 = vector.broadcast %167 : i32 to vector<1x256xi32>
    %169 = arith.muli %154, %168 : vector<1x256xi32>
    %170 = arith.addi %166, %169 : vector<1x256xi32>
    %c1_i32_44 = arith.constant 1 : i32
    %171 = arith.cmpi eq, %5, %c1_i32_44 : i32
    %172 = arith.select %171, %163, %170 : vector<1x256xi32>
    %c524287_i32_45 = arith.constant 524287 : i32
    %173 = vector.broadcast %c524287_i32_45 : i32 to vector<1x256xi32>
    %174 = arith.andi %172, %173 : vector<1x256xi32>
    %c1_i32_46 = arith.constant 1 : i32
    %175 = vector.broadcast %c1_i32_46 : i32 to vector<1x256xi32>
    %176 = arith.addi %14, %175 : vector<1x256xi32>
    %c0_i32_47 = arith.constant 0 : i32
    %177 = vector.broadcast %c0_i32_47 : i32 to vector<1x256xi32>
    %178 = arith.addi %15, %177 : vector<1x256xi32>
    %cst_48 = arith.constant 1.000000e+00 : f32
    %179 = vector.broadcast %cst_48 : f32 to vector<1x256xf32>
    %180 = arith.subf %179, %18 : vector<1x256xf32>
    %181 = arith.mulf %17, %180 : vector<1x256xf32>
    %c1_i32_49 = arith.constant 1 : i32
    %182 = vector.broadcast %c1_i32_49 : i32 to vector<1x256xi32>
    %183 = arith.addi %16, %182 : vector<1x256xi32>
    %184 = arith.mulf %181, %19 : vector<1x256xf32>
    %c1_i32_50 = arith.constant 1 : i32
    %185 = vector.broadcast %c1_i32_50 : i32 to vector<1x256xi32>
    %186 = arith.muli %176, %185 : vector<1x256xi32>
    %c-1640531535_i32_51 = arith.constant -1640531535 : i32
    %187 = vector.broadcast %c-1640531535_i32_51 : i32 to vector<1x256xi32>
    %188 = arith.muli %178, %187 : vector<1x256xi32>
    %189 = arith.xori %186, %188 : vector<1x256xi32>
    %c805459861_i32_52 = arith.constant 805459861 : i32
    %190 = vector.broadcast %c805459861_i32_52 : i32 to vector<1x256xi32>
    %191 = arith.muli %183, %190 : vector<1x256xi32>
    %192 = arith.xori %189, %191 : vector<1x256xi32>
    %193 = vector.broadcast %3 : i32 to vector<1x256xi32>
    %194 = arith.muli %178, %193 : vector<1x256xi32>
    %195 = arith.addi %176, %194 : vector<1x256xi32>
    %196 = arith.muli %3, %3 : i32
    %197 = vector.broadcast %196 : i32 to vector<1x256xi32>
    %198 = arith.muli %183, %197 : vector<1x256xi32>
    %199 = arith.addi %195, %198 : vector<1x256xi32>
    %c1_i32_53 = arith.constant 1 : i32
    %200 = arith.cmpi eq, %5, %c1_i32_53 : i32
    %201 = arith.select %200, %192, %199 : vector<1x256xi32>
    %c524287_i32_54 = arith.constant 524287 : i32
    %202 = vector.broadcast %c524287_i32_54 : i32 to vector<1x256xi32>
    %203 = arith.andi %201, %202 : vector<1x256xi32>
    %c0_i32_55 = arith.constant 0 : i32
    %204 = vector.broadcast %c0_i32_55 : i32 to vector<1x256xi32>
    %205 = arith.addi %14, %204 : vector<1x256xi32>
    %cst_56 = arith.constant 1.000000e+00 : f32
    %206 = vector.broadcast %cst_56 : f32 to vector<1x256xf32>
    %207 = arith.subf %206, %17 : vector<1x256xf32>
    %c1_i32_57 = arith.constant 1 : i32
    %208 = vector.broadcast %c1_i32_57 : i32 to vector<1x256xi32>
    %209 = arith.addi %15, %208 : vector<1x256xi32>
    %210 = arith.mulf %207, %18 : vector<1x256xf32>
    %c1_i32_58 = arith.constant 1 : i32
    %211 = vector.broadcast %c1_i32_58 : i32 to vector<1x256xi32>
    %212 = arith.addi %16, %211 : vector<1x256xi32>
    %213 = arith.mulf %210, %19 : vector<1x256xf32>
    %c1_i32_59 = arith.constant 1 : i32
    %214 = vector.broadcast %c1_i32_59 : i32 to vector<1x256xi32>
    %215 = arith.muli %205, %214 : vector<1x256xi32>
    %c-1640531535_i32_60 = arith.constant -1640531535 : i32
    %216 = vector.broadcast %c-1640531535_i32_60 : i32 to vector<1x256xi32>
    %217 = arith.muli %209, %216 : vector<1x256xi32>
    %218 = arith.xori %215, %217 : vector<1x256xi32>
    %c805459861_i32_61 = arith.constant 805459861 : i32
    %219 = vector.broadcast %c805459861_i32_61 : i32 to vector<1x256xi32>
    %220 = arith.muli %212, %219 : vector<1x256xi32>
    %221 = arith.xori %218, %220 : vector<1x256xi32>
    %222 = vector.broadcast %3 : i32 to vector<1x256xi32>
    %223 = arith.muli %209, %222 : vector<1x256xi32>
    %224 = arith.addi %205, %223 : vector<1x256xi32>
    %225 = arith.muli %3, %3 : i32
    %226 = vector.broadcast %225 : i32 to vector<1x256xi32>
    %227 = arith.muli %212, %226 : vector<1x256xi32>
    %228 = arith.addi %224, %227 : vector<1x256xi32>
    %c1_i32_62 = arith.constant 1 : i32
    %229 = arith.cmpi eq, %5, %c1_i32_62 : i32
    %230 = arith.select %229, %221, %228 : vector<1x256xi32>
    %c524287_i32_63 = arith.constant 524287 : i32
    %231 = vector.broadcast %c524287_i32_63 : i32 to vector<1x256xi32>
    %232 = arith.andi %230, %231 : vector<1x256xi32>
    %c1_i32_64 = arith.constant 1 : i32
    %233 = vector.broadcast %c1_i32_64 : i32 to vector<1x256xi32>
    %234 = arith.addi %14, %233 : vector<1x256xi32>
    %c1_i32_65 = arith.constant 1 : i32
    %235 = vector.broadcast %c1_i32_65 : i32 to vector<1x256xi32>
    %236 = arith.addi %15, %235 : vector<1x256xi32>
    %237 = arith.mulf %17, %18 : vector<1x256xf32>
    %c1_i32_66 = arith.constant 1 : i32
    %238 = vector.broadcast %c1_i32_66 : i32 to vector<1x256xi32>
    %239 = arith.addi %16, %238 : vector<1x256xi32>
    %240 = arith.mulf %237, %19 : vector<1x256xf32>
    %c1_i32_67 = arith.constant 1 : i32
    %241 = vector.broadcast %c1_i32_67 : i32 to vector<1x256xi32>
    %242 = arith.muli %234, %241 : vector<1x256xi32>
    %c-1640531535_i32_68 = arith.constant -1640531535 : i32
    %243 = vector.broadcast %c-1640531535_i32_68 : i32 to vector<1x256xi32>
    %244 = arith.muli %236, %243 : vector<1x256xi32>
    %245 = arith.xori %242, %244 : vector<1x256xi32>
    %c805459861_i32_69 = arith.constant 805459861 : i32
    %246 = vector.broadcast %c805459861_i32_69 : i32 to vector<1x256xi32>
    %247 = arith.muli %239, %246 : vector<1x256xi32>
    %248 = arith.xori %245, %247 : vector<1x256xi32>
    %249 = vector.broadcast %3 : i32 to vector<1x256xi32>
    %250 = arith.muli %236, %249 : vector<1x256xi32>
    %251 = arith.addi %234, %250 : vector<1x256xi32>
    %252 = arith.muli %3, %3 : i32
    %253 = vector.broadcast %252 : i32 to vector<1x256xi32>
    %254 = arith.muli %239, %253 : vector<1x256xi32>
    %255 = arith.addi %251, %254 : vector<1x256xi32>
    %c1_i32_70 = arith.constant 1 : i32
    %256 = arith.cmpi eq, %5, %c1_i32_70 : i32
    %257 = arith.select %256, %248, %255 : vector<1x256xi32>
    %c524287_i32_71 = arith.constant 524287 : i32
    %258 = vector.broadcast %c524287_i32_71 : i32 to vector<1x256xi32>
    %259 = arith.andi %257, %258 : vector<1x256xi32>
    %260 = tpu.concatenate %52, %83, %114, %143, %174, %203, %232, %259 in 0 : vector<1x256xi32>, vector<1x256xi32>, vector<1x256xi32>, vector<1x256xi32>, vector<1x256xi32>, vector<1x256xi32>, vector<1x256xi32>, vector<1x256xi32> -> vector<8x256xi32>
    %261 = tpu.concatenate %33, %64, %95, %124, %155, %184, %213, %240 in 0 : vector<1x256xf32>, vector<1x256xf32>, vector<1x256xf32>, vector<1x256xf32>, vector<1x256xf32>, vector<1x256xf32>, vector<1x256xf32>, vector<1x256xf32> -> vector<8x256xf32>
    %c0_72 = arith.constant 0 : index
    %c0_73 = arith.constant 0 : index
    %262 = vector.load %arg9[%c0_72, %c0_73] : memref<8x256xi32, #tpu.memory_space<vmem>>, vector<8x256xi32>
    tpu.vector_store %arg9[%c0_72, %c0_73], %260 {strides = array<i32>} : memref<8x256xi32, #tpu.memory_space<vmem>>, vector<8x256xi32>,
    %c0_74 = arith.constant 0 : index
    %c0_75 = arith.constant 0 : index
    %263 = vector.load %arg10[%c0_74, %c0_75] : memref<8x256xf32, #tpu.memory_space<vmem>>, vector<8x256xf32>
    tpu.vector_store %arg10[%c0_74, %c0_75], %261 {strides = array<i32>} : memref<8x256xf32, #tpu.memory_space<vmem>>, vector<8x256xf32>,
    %c0_i32_76 = arith.constant 0 : i32
    %264 = tpu.memref_slice %arg13[%c0_i32_76] : memref<2x!tpu.dma_semaphore, #tpu.memory_space<semaphore_mem>> -> memref<1x!tpu.dma_semaphore, #tpu.memory_space<semaphore_mem>>
    %265 = tpu.memref_squeeze %264 : memref<1x!tpu.dma_semaphore, #tpu.memory_space<semaphore_mem>> -> memref<!tpu.dma_semaphore, #tpu.memory_space<semaphore_mem>>
    tpu.enqueue_dma source(%arg9 : memref<8x256xi32, #tpu.memory_space<vmem>>) target(%arg11 : memref<8x256xi32, #tpu.memory_space<smem>>) target_semaphore(%265 : memref<!tpu.dma_semaphore, #tpu.memory_space<semaphore_mem>>)
    %c1_i32_77 = arith.constant 1 : i32
    %266 = tpu.memref_slice %arg13[%c1_i32_77] : memref<2x!tpu.dma_semaphore, #tpu.memory_space<semaphore_mem>> -> memref<1x!tpu.dma_semaphore, #tpu.memory_space<semaphore_mem>>
    %267 = tpu.memref_squeeze %266 : memref<1x!tpu.dma_semaphore, #tpu.memory_space<semaphore_mem>> -> memref<!tpu.dma_semaphore, #tpu.memory_space<semaphore_mem>>
    tpu.enqueue_dma source(%arg10 : memref<8x256xf32, #tpu.memory_space<vmem>>) target(%arg12 : memref<8x256xf32, #tpu.memory_space<smem>>) target_semaphore(%267 : memref<!tpu.dma_semaphore, #tpu.memory_space<semaphore_mem>>)
    %c0_i32_78 = arith.constant 0 : i32
    %268 = tpu.memref_slice %arg13[%c0_i32_78] : memref<2x!tpu.dma_semaphore, #tpu.memory_space<semaphore_mem>> -> memref<1x!tpu.dma_semaphore, #tpu.memory_space<semaphore_mem>>
    %269 = tpu.memref_squeeze %268 : memref<1x!tpu.dma_semaphore, #tpu.memory_space<semaphore_mem>> -> memref<!tpu.dma_semaphore, #tpu.memory_space<semaphore_mem>>
    tpu.wait_dma2 semaphore(%269 : memref<!tpu.dma_semaphore, #tpu.memory_space<semaphore_mem>>) src(%arg9 : memref<8x256xi32, #tpu.memory_space<vmem>>) dst(%arg11 : memref<8x256xi32, #tpu.memory_space<smem>>)
    %c1_i32_79 = arith.constant 1 : i32
    %270 = tpu.memref_slice %arg13[%c1_i32_79] : memref<2x!tpu.dma_semaphore, #tpu.memory_space<semaphore_mem>> -> memref<1x!tpu.dma_semaphore, #tpu.memory_space<semaphore_mem>>
    %271 = tpu.memref_squeeze %270 : memref<1x!tpu.dma_semaphore, #tpu.memory_space<semaphore_mem>> -> memref<!tpu.dma_semaphore, #tpu.memory_space<semaphore_mem>>
    tpu.wait_dma2 semaphore(%271 : memref<!tpu.dma_semaphore, #tpu.memory_space<semaphore_mem>>) src(%arg10 : memref<8x256xf32, #tpu.memory_space<vmem>>) dst(%arg12 : memref<8x256xf32, #tpu.memory_space<smem>>)
    %272 = tpu.iota {dimensions = array<i32: 1>} : vector<1x128xi32>
    %c1_i32_80 = arith.constant 1 : i32
    %273 = vector.broadcast %c1_i32_80 : i32 to vector<1x128xi32>
    %274 = arith.shrsi %272, %273 : vector<1x128xi32>
    %c0_i32_81 = arith.constant 0 : i32
    %c256_i32 = arith.constant 256 : i32
    %275 = arith.addi %c0_i32_81, %c256_i32 : i32
    %c1_i32_82 = arith.constant 1 : i32
    scf.for %arg14 = %c0_i32_81 to %275 step %c1_i32_82  : i32 {
      %cst_94 = arith.constant 0.000000e+00 : f32
      %295 = vector.broadcast %cst_94 : f32 to vector<1x128xf32>
      %c0_95 = arith.constant 0 : index
      %296 = arith.index_cast %arg14 : i32 to index
      %297 = memref.load %arg11[%c0_95, %296] : memref<8x256xi32, #tpu.memory_space<smem>>
      %c0_96 = arith.constant 0 : index
      %298 = arith.index_cast %arg14 : i32 to index
      %299 = memref.load %arg12[%c0_96, %298] : memref<8x256xf32, #tpu.memory_space<smem>>
      %c6_i32 = arith.constant 6 : i32
      %300 = arith.shrsi %297, %c6_i32 : i32
      %c63_i32 = arith.constant 63 : i32
      %301 = arith.andi %297, %c63_i32 : i32
      %c0_97 = arith.constant 0 : index
      %302 = arith.index_cast %300 : i32 to index
      %c0_98 = arith.constant 0 : index
      %303 = vector.load %arg6[%c0_97, %302, %c0_98] : memref<1x8192x128xf32, #tpu.memory_space<vmem>>, vector<1x1x128xf32>
      %304 = vector.shape_cast %303 : vector<1x1x128xf32> to vector<1x128xf32>
      %305 = vector.broadcast %301 : i32 to vector<1x128xi32>
      %306 = arith.cmpi eq, %274, %305 : vector<1x128xi32>
      %307 = vector.broadcast %299 : f32 to vector<1x128xf32>
      %308 = arith.mulf %304, %307 : vector<1x128xf32>
      %cst_99 = arith.constant 0.000000e+00 : f32
      %309 = vector.broadcast %cst_99 : f32 to vector<1x128xf32>
      %310 = arith.select %306, %308, %309 : vector<1x128xi1>, vector<1x128xf32>
      %311 = arith.addf %295, %310 : vector<1x128xf32>
      %c1 = arith.constant 1 : index
      %312 = arith.index_cast %arg14 : i32 to index
      %313 = memref.load %arg11[%c1, %312] : memref<8x256xi32, #tpu.memory_space<smem>>
      %c1_100 = arith.constant 1 : index
      %314 = arith.index_cast %arg14 : i32 to index
      %315 = memref.load %arg12[%c1_100, %314] : memref<8x256xf32, #tpu.memory_space<smem>>
      %c6_i32_101 = arith.constant 6 : i32
      %316 = arith.shrsi %313, %c6_i32_101 : i32
      %c63_i32_102 = arith.constant 63 : i32
      %317 = arith.andi %313, %c63_i32_102 : i32
      %c0_103 = arith.constant 0 : index
      %318 = arith.index_cast %316 : i32 to index
      %c0_104 = arith.constant 0 : index
      %319 = vector.load %arg6[%c0_103, %318, %c0_104] : memref<1x8192x128xf32, #tpu.memory_space<vmem>>, vector<1x1x128xf32>
      %320 = vector.shape_cast %319 : vector<1x1x128xf32> to vector<1x128xf32>
      %321 = vector.broadcast %317 : i32 to vector<1x128xi32>
      %322 = arith.cmpi eq, %274, %321 : vector<1x128xi32>
      %323 = vector.broadcast %315 : f32 to vector<1x128xf32>
      %324 = arith.mulf %320, %323 : vector<1x128xf32>
      %cst_105 = arith.constant 0.000000e+00 : f32
      %325 = vector.broadcast %cst_105 : f32 to vector<1x128xf32>
      %326 = arith.select %322, %324, %325 : vector<1x128xi1>, vector<1x128xf32>
      %327 = arith.addf %311, %326 : vector<1x128xf32>
      %c2 = arith.constant 2 : index
      %328 = arith.index_cast %arg14 : i32 to index
      %329 = memref.load %arg11[%c2, %328] : memref<8x256xi32, #tpu.memory_space<smem>>
      %c2_106 = arith.constant 2 : index
      %330 = arith.index_cast %arg14 : i32 to index
      %331 = memref.load %arg12[%c2_106, %330] : memref<8x256xf32, #tpu.memory_space<smem>>
      %c6_i32_107 = arith.constant 6 : i32
      %332 = arith.shrsi %329, %c6_i32_107 : i32
      %c63_i32_108 = arith.constant 63 : i32
      %333 = arith.andi %329, %c63_i32_108 : i32
      %c0_109 = arith.constant 0 : index
      %334 = arith.index_cast %332 : i32 to index
      %c0_110 = arith.constant 0 : index
      %335 = vector.load %arg6[%c0_109, %334, %c0_110] : memref<1x8192x128xf32, #tpu.memory_space<vmem>>, vector<1x1x128xf32>
      %336 = vector.shape_cast %335 : vector<1x1x128xf32> to vector<1x128xf32>
      %337 = vector.broadcast %333 : i32 to vector<1x128xi32>
      %338 = arith.cmpi eq, %274, %337 : vector<1x128xi32>
      %339 = vector.broadcast %331 : f32 to vector<1x128xf32>
      %340 = arith.mulf %336, %339 : vector<1x128xf32>
      %cst_111 = arith.constant 0.000000e+00 : f32
      %341 = vector.broadcast %cst_111 : f32 to vector<1x128xf32>
      %342 = arith.select %338, %340, %341 : vector<1x128xi1>, vector<1x128xf32>
      %343 = arith.addf %327, %342 : vector<1x128xf32>
      %c3 = arith.constant 3 : index
      %344 = arith.index_cast %arg14 : i32 to index
      %345 = memref.load %arg11[%c3, %344] : memref<8x256xi32, #tpu.memory_space<smem>>
      %c3_112 = arith.constant 3 : index
      %346 = arith.index_cast %arg14 : i32 to index
      %347 = memref.load %arg12[%c3_112, %346] : memref<8x256xf32, #tpu.memory_space<smem>>
      %c6_i32_113 = arith.constant 6 : i32
      %348 = arith.shrsi %345, %c6_i32_113 : i32
      %c63_i32_114 = arith.constant 63 : i32
      %349 = arith.andi %345, %c63_i32_114 : i32
      %c0_115 = arith.constant 0 : index
      %350 = arith.index_cast %348 : i32 to index
      %c0_116 = arith.constant 0 : index
      %351 = vector.load %arg6[%c0_115, %350, %c0_116] : memref<1x8192x128xf32, #tpu.memory_space<vmem>>, vector<1x1x128xf32>
      %352 = vector.shape_cast %351 : vector<1x1x128xf32> to vector<1x128xf32>
      %353 = vector.broadcast %349 : i32 to vector<1x128xi32>
      %354 = arith.cmpi eq, %274, %353 : vector<1x128xi32>
      %355 = vector.broadcast %347 : f32 to vector<1x128xf32>
      %356 = arith.mulf %352, %355 : vector<1x128xf32>
      %cst_117 = arith.constant 0.000000e+00 : f32
      %357 = vector.broadcast %cst_117 : f32 to vector<1x128xf32>
      %358 = arith.select %354, %356, %357 : vector<1x128xi1>, vector<1x128xf32>
      %359 = arith.addf %343, %358 : vector<1x128xf32>
      %c4 = arith.constant 4 : index
      %360 = arith.index_cast %arg14 : i32 to index
      %361 = memref.load %arg11[%c4, %360] : memref<8x256xi32, #tpu.memory_space<smem>>
      %c4_118 = arith.constant 4 : index
      %362 = arith.index_cast %arg14 : i32 to index
      %363 = memref.load %arg12[%c4_118, %362] : memref<8x256xf32, #tpu.memory_space<smem>>
      %c6_i32_119 = arith.constant 6 : i32
      %364 = arith.shrsi %361, %c6_i32_119 : i32
      %c63_i32_120 = arith.constant 63 : i32
      %365 = arith.andi %361, %c63_i32_120 : i32
      %c0_121 = arith.constant 0 : index
      %366 = arith.index_cast %364 : i32 to index
      %c0_122 = arith.constant 0 : index
      %367 = vector.load %arg6[%c0_121, %366, %c0_122] : memref<1x8192x128xf32, #tpu.memory_space<vmem>>, vector<1x1x128xf32>
      %368 = vector.shape_cast %367 : vector<1x1x128xf32> to vector<1x128xf32>
      %369 = vector.broadcast %365 : i32 to vector<1x128xi32>
      %370 = arith.cmpi eq, %274, %369 : vector<1x128xi32>
      %371 = vector.broadcast %363 : f32 to vector<1x128xf32>
      %372 = arith.mulf %368, %371 : vector<1x128xf32>
      %cst_123 = arith.constant 0.000000e+00 : f32
      %373 = vector.broadcast %cst_123 : f32 to vector<1x128xf32>
      %374 = arith.select %370, %372, %373 : vector<1x128xi1>, vector<1x128xf32>
      %375 = arith.addf %359, %374 : vector<1x128xf32>
      %c5 = arith.constant 5 : index
      %376 = arith.index_cast %arg14 : i32 to index
      %377 = memref.load %arg11[%c5, %376] : memref<8x256xi32, #tpu.memory_space<smem>>
      %c5_124 = arith.constant 5 : index
      %378 = arith.index_cast %arg14 : i32 to index
      %379 = memref.load %arg12[%c5_124, %378] : memref<8x256xf32, #tpu.memory_space<smem>>
      %c6_i32_125 = arith.constant 6 : i32
      %380 = arith.shrsi %377, %c6_i32_125 : i32
      %c63_i32_126 = arith.constant 63 : i32
      %381 = arith.andi %377, %c63_i32_126 : i32
      %c0_127 = arith.constant 0 : index
      %382 = arith.index_cast %380 : i32 to index
      %c0_128 = arith.constant 0 : index
      %383 = vector.load %arg6[%c0_127, %382, %c0_128] : memref<1x8192x128xf32, #tpu.memory_space<vmem>>, vector<1x1x128xf32>
      %384 = vector.shape_cast %383 : vector<1x1x128xf32> to vector<1x128xf32>
      %385 = vector.broadcast %381 : i32 to vector<1x128xi32>
      %386 = arith.cmpi eq, %274, %385 : vector<1x128xi32>
      %387 = vector.broadcast %379 : f32 to vector<1x128xf32>
      %388 = arith.mulf %384, %387 : vector<1x128xf32>
      %cst_129 = arith.constant 0.000000e+00 : f32
      %389 = vector.broadcast %cst_129 : f32 to vector<1x128xf32>
      %390 = arith.select %386, %388, %389 : vector<1x128xi1>, vector<1x128xf32>
      %391 = arith.addf %375, %390 : vector<1x128xf32>
      %c6 = arith.constant 6 : index
      %392 = arith.index_cast %arg14 : i32 to index
      %393 = memref.load %arg11[%c6, %392] : memref<8x256xi32, #tpu.memory_space<smem>>
      %c6_130 = arith.constant 6 : index
      %394 = arith.index_cast %arg14 : i32 to index
      %395 = memref.load %arg12[%c6_130, %394] : memref<8x256xf32, #tpu.memory_space<smem>>
      %c6_i32_131 = arith.constant 6 : i32
      %396 = arith.shrsi %393, %c6_i32_131 : i32
      %c63_i32_132 = arith.constant 63 : i32
      %397 = arith.andi %393, %c63_i32_132 : i32
      %c0_133 = arith.constant 0 : index
      %398 = arith.index_cast %396 : i32 to index
      %c0_134 = arith.constant 0 : index
      %399 = vector.load %arg6[%c0_133, %398, %c0_134] : memref<1x8192x128xf32, #tpu.memory_space<vmem>>, vector<1x1x128xf32>
      %400 = vector.shape_cast %399 : vector<1x1x128xf32> to vector<1x128xf32>
      %401 = vector.broadcast %397 : i32 to vector<1x128xi32>
      %402 = arith.cmpi eq, %274, %401 : vector<1x128xi32>
      %403 = vector.broadcast %395 : f32 to vector<1x128xf32>
      %404 = arith.mulf %400, %403 : vector<1x128xf32>
      %cst_135 = arith.constant 0.000000e+00 : f32
      %405 = vector.broadcast %cst_135 : f32 to vector<1x128xf32>
      %406 = arith.select %402, %404, %405 : vector<1x128xi1>, vector<1x128xf32>
      %407 = arith.addf %391, %406 : vector<1x128xf32>
      %c7 = arith.constant 7 : index
      %408 = arith.index_cast %arg14 : i32 to index
      %409 = memref.load %arg11[%c7, %408] : memref<8x256xi32, #tpu.memory_space<smem>>
      %c7_136 = arith.constant 7 : index
      %410 = arith.index_cast %arg14 : i32 to index
      %411 = memref.load %arg12[%c7_136, %410] : memref<8x256xf32, #tpu.memory_space<smem>>
      %c6_i32_137 = arith.constant 6 : i32
      %412 = arith.shrsi %409, %c6_i32_137 : i32
      %c63_i32_138 = arith.constant 63 : i32
      %413 = arith.andi %409, %c63_i32_138 : i32
      %c0_139 = arith.constant 0 : index
      %414 = arith.index_cast %412 : i32 to index
      %c0_140 = arith.constant 0 : index
      %415 = vector.load %arg6[%c0_139, %414, %c0_140] : memref<1x8192x128xf32, #tpu.memory_space<vmem>>, vector<1x1x128xf32>
      %416 = vector.shape_cast %415 : vector<1x1x128xf32> to vector<1x128xf32>
      %417 = vector.broadcast %413 : i32 to vector<1x128xi32>
      %418 = arith.cmpi eq, %274, %417 : vector<1x128xi32>
      %419 = vector.broadcast %411 : f32 to vector<1x128xf32>
      %420 = arith.mulf %416, %419 : vector<1x128xf32>
      %cst_141 = arith.constant 0.000000e+00 : f32
      %421 = vector.broadcast %cst_141 : f32 to vector<1x128xf32>
      %422 = arith.select %418, %420, %421 : vector<1x128xi1>, vector<1x128xf32>
      %423 = arith.addf %407, %422 : vector<1x128xf32>
      %424 = arith.index_cast %arg14 : i32 to index
      %c0_142 = arith.constant 0 : index
      %425 = vector.load %arg8[%424, %c0_142] : memref<256x128xf32, #tpu.memory_space<vmem>>, vector<1x128xf32>
      tpu.vector_store %arg8[%424, %c0_142], %423 {strides = array<i32>} : memref<256x128xf32, #tpu.memory_space<vmem>>, vector<1x128xf32>,
    }
    %c256_i32_83 = arith.constant 256 : i32
    %c0_84 = arith.constant 0 : index
    %c0_85 = arith.constant 0 : index
    %276 = vector.load %arg8[%c0_84, %c0_85] : memref<256x128xf32, #tpu.memory_space<vmem>>, vector<256x128xf32>
    %277 = tpu.iota {dimensions = array<i32: 1>} : vector<1x128xi32>
    %cst_86 = arith.constant dense<0.000000e+00> : vector<256xf32>
    %278 = vector.multi_reduction <add>, %276, %cst_86 [1] : vector<256x128xf32> to vector<256xf32>
    %279 = vector.shape_cast %278 : vector<256xf32> to vector<256x1xf32>
    %c1_i32_87 = arith.constant 1 : i32
    %280 = vector.broadcast %c1_i32_87 : i32 to vector<1x128xi32>
    %281 = arith.andi %277, %280 : vector<1x128xi32>
    %c0_i32_88 = arith.constant 0 : i32
    %282 = vector.broadcast %c0_i32_88 : i32 to vector<1x128xi32>
    %283 = arith.cmpi eq, %281, %282 : vector<1x128xi32>
    %cst_89 = arith.constant 0.000000e+00 : f32
    %284 = vector.shape_cast %283 : vector<1x128xi1> to vector<1x128xi1>
    %285 = vector.broadcast %284 : vector<1x128xi1> to vector<256x128xi1>
    %286 = vector.broadcast %cst_89 : f32 to vector<256x128xf32>
    %287 = arith.select %285, %276, %286 : vector<256x128xi1>, vector<256x128xf32>
    %cst_90 = arith.constant dense<0.000000e+00> : vector<256xf32>
    %288 = vector.multi_reduction <add>, %287, %cst_90 [1] : vector<256x128xf32> to vector<256xf32>
    %289 = vector.shape_cast %288 : vector<256xf32> to vector<256x1xf32>
    %290 = arith.subf %279, %289 : vector<256x1xf32>
    %291 = tpu.concatenate %289, %290 in 1 : vector<256x1xf32>, vector<256x1xf32> -> vector<256x2xf32>
    %c0_91 = arith.constant 0 : index
    %c0_92 = arith.constant 0 : index
    %c0_93 = arith.constant 0 : index
    %292 = vector.load %arg7[%c0_91, %c0_92, %c0_93] : memref<1x256x2xf32, #tpu.memory_space<vmem>>, vector<1x256x2xf32>
    %293 = vector.shape_cast %292 : vector<1x256x2xf32> to vector<256x2xf32>
    %294 = vector.shape_cast %291 : vector<256x2xf32> to vector<1x256x2xf32>
    tpu.vector_store %arg7[%c0_91, %c0_92, %c0_93], %294 {strides = array<i32>} : memref<1x256x2xf32, #tpu.memory_space<vmem>>, vector<1x256x2xf32>,
    return
  }
  func.func @transform_0(%arg0: i32, %arg1: i32) -> i32 {
    %c0_i32 = arith.constant 0 : i32
    %c0_i32_0 = arith.constant 0 : i32
    return %c0_i32 : i32
  }
  func.func @transform_1(%arg0: i32, %arg1: i32) -> i32 {
    %c0_i32 = arith.constant 0 : i32
    %c0_i32_0 = arith.constant 0 : i32
    return %c0_i32 : i32
  }
  func.func @transform_2(%arg0: i32, %arg1: i32) -> i32 {
    %c0_i32 = arith.constant 0 : i32
    %c0_i32_0 = arith.constant 0 : i32
    return %c0_i32 : i32
  }
  func.func @transform_3(%arg0: i32, %arg1: i32) -> (i32, i32) {
    %c0_i32 = arith.constant 0 : i32
    %c0_i32_0 = arith.constant 0 : i32
    return %c0_i32, %arg1 : i32, i32
  }
  func.func @transform_4(%arg0: i32, %arg1: i32) -> (i32, i32, i32) {
    %c0_i32 = arith.constant 0 : i32
    %c0_i32_0 = arith.constant 0 : i32
    %c0_i32_1 = arith.constant 0 : i32
    return %arg0, %c0_i32, %c0_i32_0 : i32, i32, i32
  }
  func.func @transform_5(%arg0: i32, %arg1: i32) -> (i32, i32, i32) {
    %c0_i32 = arith.constant 0 : i32
    %c0_i32_0 = arith.constant 0 : i32
    return %arg0, %arg1, %c0_i32 : i32, i32, i32
  }
}

</mosaic_0001>

<llo_original>
// kernel: hash_grid_encode.1
$region0: #{hash_grid_encode.1}
  #allocation0 [shape = 'u32[]', space=smem, size = 0x4, offset = 0x4, fixed_abs, tag = 'smem constant byte address 0x4 - core index']
  #allocation1 [shape = 'u32[144,128]{1,0:T(1,128)}', space=vmem, size = 0x12000, scoped, tag = 'internal scratch']
  #allocation2 [shape = 'f32[256,128]{1,0:T(8,128)}', space=vmem, size = 0x20000, scoped, tag = 'scratch operand']
  #allocation3 [shape = 's32[8,256]{1,0:T(8,128)}', space=vmem, size = 0x2000, scoped, tag = 'scratch operand']
  #allocation4 [shape = 'f32[8,256]{1,0:T(8,128)}', space=vmem, size = 0x2000, scoped, tag = 'scratch operand']
  #allocation5 [shape = 's32[8,256]{1,0:T(8,128)}', space=smem, size = 0x2000, scoped, tag = 'scratch operand']
  #allocation6 [shape = 'f32[8,256]{1,0:T(8,128)}', space=smem, size = 0x2000, scoped, tag = 'scratch operand']
  #allocation7 [shape = 's32[2]{0}', space=sflag, size = 0x8, scoped, tag = 'scratch operand']
  #allocation15 [shape = 's32[]', space=sflag, size = 0x4, offset = 0, fixed_abs, tag = 'sflag constant byte address 0x0 - dummy sync flag']
  #allocation16 [shape = 's32[]', space=sflag, size = 0x4, offset = 0, fixed_abs, tag = 'sflag constant byte address 0x0 - dummy sync flag']
  #allocation17 [shape = 'u32[]', space=smem, size = 0x4, offset = 0x44, fixed_abs, tag = 'smem constant byte address 0x44 - assertion arg 0']
  #allocation18 [shape = 'u32[]', space=smem, size = 0x4, offset = 0x48, fixed_abs, tag = 'smem constant byte address 0x48 - assertion arg 1']
  #allocation19 [shape = 's32[]', space=sflag, size = 0x4, offset = 0, fixed_abs, tag = 'sflag constant byte address 0x0 - dummy sync flag']
  #allocation20 [shape = 's32[]', space=sflag, size = 0x4, offset = 0, fixed_abs, tag = 'sflag constant byte address 0x0 - dummy sync flag']
  %s0 = inlined_call_operand.hbm [shape: f32[16], index: 0, kind: input, shape index: {}]
  %s1 = inlined_call_operand.hbm [shape: s32[16], index: 1, kind: input, shape index: {}]
  %s2 = inlined_call_operand.hbm [shape: s32[16], index: 2, kind: input, shape index: {}]
  %s3 = inlined_call_operand.vmem [shape: f32[3,256], index: 3, kind: input, shape index: {}]
  %s4 = inlined_call_operand.hbm [shape: f32[16,8192,128], index: 4, kind: input, shape index: {}]
  %s5 = inlined_call_operand.vmem [shape: f32[16,256,2], index: 5, kind: output, shape index: {}]
  %s6 = sld [smem:[#allocation0]]
  $region84: #{hash_grid_encode.1} parent=0
    _
  %s8 = ssub.s32 1, %s6
  %s9 = scalar_select 0, %s8, %s6
  $region1: #{hash_grid_encode.1} parent=0
    #allocation8 [shape = 'u8[512]{0}', space=smem, size = 0x200, scoped, tag = 'input window, operand 0, single buffered']
    #allocation9 [shape = 's32[2]{0}', space=sflag, size = 0x8, scoped, tag = 'scoped memory for hash_grid_encode.1']
    #allocation10 [shape = 's32[2]{0}', space=sflag, size = 0x8, scoped, tag = 'scoped memory for hash_grid_encode.1']
    #allocation11 [shape = 'u8[512]{0}', space=smem, size = 0x200, scoped, tag = 'input window, operand 1, single buffered']
    #allocation12 [shape = 's32[1]{0}', space=sflag, size = 0x4, scoped, tag = 'scoped memory for hash_grid_encode.1']
    #allocation13 [shape = 'u8[512]{0}', space=smem, size = 0x200, scoped, tag = 'input window, operand 2, single buffered']
    #allocation14 [shape = 'u8[8388608]{0}', space=vmem, size = 0x800000, scoped, tag = 'input window, operand 4']
    %10 = vsyncpa [#allocation10], 0
    %11 = vsyncpa [#allocation12], 0
    %12 = vsyncpa [#allocation9], 0
    %s13 = scalar_lea.sflag [#allocation9], 1
    %14 = vsyncpa %s13, 0
    loop: start=0, step=1, limit=18
    $region2: #{hash_grid_encode.1} parent=1 // loop_pre_header
      _
    $region3: #{hash_grid_encode.1} parent=1 // loop_header
      %s16 = sphi 0, %s20
      %p17 = scmp.ge.s32.totalorder %s16, 18
      %s23 = sphi 0, %s35
      %s24 = sphi 0, %s31
      %s25 = sphi 0, %s23
      %s26 = sphi 0, %s24
      %s27 = sphi 0, %s25
      %s28 = sphi 0, %s26
      %s36 = sphi 0, %s36
      %s38 = sphi 0, %s36
      %s39 = sphi 0, %s38
      %s53 = sphi 0, %s39
      %s57 = sphi 0, %s57
      %s59 = sphi 0, %s57
      %s60 = sphi 0, %s59
      %s74 = sphi 0, %s60
      %s78 = sphi 0, %s78
      %s80 = sphi 0, %s78
      %s81 = sphi 0, %s80
      %s95 = sphi 0, %s81
      %s101 = sphi 0, %s103
      %s104 = sphi 0, %s101
      %s105 = sphi 0, %s104
      %s121 = sphi 0, %s105
      %s127 = sphi 0, %s129
      %s130 = sphi 0, %s127
      %s131 = sphi 0, %s130
      %s147 = sphi 0, %s131
      %s155 = sphi 0, %s157
      %s158 = sphi 0, %s155
      %s159 = sphi 0, %s158
      %s175 = sphi 0, %s159
    $region4: #{hash_grid_encode.1} parent=1 // loop_header_branch
      %19 = sbr.rel (%p17) target = $region8
    $region5: #{hash_grid_encode.1} parent=1 // loop_body
      %s21 = ssub.s32 %s16, 1
      %s22 = ssub.s32 %s16, 2
      %s29 = sadd.s32 1, %s24
      %p30 = scmp.ge.s32.totalorder %s29, 1
      %s31 = scalar_select %p30, 0, %s29
      %s32 = sadd.s32 1, %s23
      %s33 = scalar_select %p30, %s32, %s23
      %p34 = scmp.ge.s32.totalorder %s33, 16
      %s35 = scalar_select %p34, 0, %s33
      %s37 = sadd.s32 %s36, 1
      %p40 = scmp.eq.s32.totalorder %s16, 15
      %p41 = scmp.ne.s32.totalorder %s36, %s38
      %p42 = scmp.eq.s32.totalorder %s16, 0
      %p43 = por %p41, %p42
      %p44 = scmp.ne.s32.totalorder %s36, %s38
      %p45 = scmp.eq.s32.totalorder %s21, 15
      %p46 = por %p44, %p45
      %p47 = scmp.ne.s32.totalorder %s38, %s39
      %p48 = scmp.eq.s32.totalorder %s21, 0
      %p49 = por %p47, %p48
      %p50 = scmp.ne.s32.totalorder %s38, %s39
      %p51 = scmp.eq.s32.totalorder %s22, 15
      %p52 = por %p50, %p51
      %p54 = scmp.ne.s32.totalorder %s39, %s53
      %p55 = scmp.eq.s32.totalorder %s22, 0
      %p56 = por %p54, %p55
      %s58 = sadd.s32 %s57, 1
      %p61 = scmp.eq.s32.totalorder %s16, 15
      %p62 = scmp.ne.s32.totalorder %s57, %s59
      %p63 = scmp.eq.s32.totalorder %s16, 0
      %p64 = por %p62, %p63
      %p65 = scmp.ne.s32.totalorder %s57, %s59
      %p66 = scmp.eq.s32.totalorder %s21, 15
      %p67 = por %p65, %p66
      %p68 = scmp.ne.s32.totalorder %s59, %s60
      %p69 = scmp.eq.s32.totalorder %s21, 0
      %p70 = por %p68, %p69
      %p71 = scmp.ne.s32.totalorder %s59, %s60
      %p72 = scmp.eq.s32.totalorder %s22, 15
      %p73 = por %p71, %p72
      %p75 = scmp.ne.s32.totalorder %s60, %s74
      %p76 = scmp.eq.s32.totalorder %s22, 0
      %p77 = por %p75, %p76
      %s79 = sadd.s32 %s78, 1
      %p82 = scmp.eq.s32.totalorder %s16, 15
      %p83 = scmp.ne.s32.totalorder %s78, %s80
      %p84 = scmp.eq.s32.totalorder %s16, 0
      %p85 = por %p83, %p84
      %p86 = scmp.ne.s32.totalorder %s78, %s80
      %p87 = scmp.eq.s32.totalorder %s21, 15
      %p88 = por %p86, %p87
      %p89 = scmp.ne.s32.totalorder %s80, %s81
      %p90 = scmp.eq.s32.totalorder %s21, 0
      %p91 = por %p89, %p90
      %p92 = scmp.ne.s32.totalorder %s80, %s81
      %p93 = scmp.eq.s32.totalorder %s22, 15
      %p94 = por %p92, %p93
      %p96 = scmp.ne.s32.totalorder %s81, %s95
      %p97 = scmp.eq.s32.totalorder %s22, 0
      %p98 = por %p96, %p97
      %s99 = ssub.s32 %s24, %s31
      %p100 = scmp.eq.s32.totalorder %s99, 0
      %s102 = sadd.s32 %s101, 1
      %s103 = scalar_select %p100, %s101, %s102
      %p106 = pneg %p100
      %p107 = scmp.eq.s32.totalorder %s16, 15
      %p108 = por %p106, %p107
      %p109 = scmp.ne.s32.totalorder %s101, %s104
      %p110 = scmp.eq.s32.totalorder %s16, 0
      %p111 = por %p109, %p110
      %p112 = scmp.ne.s32.totalorder %s101, %s104
      %p113 = scmp.eq.s32.totalorder %s21, 15
      %p114 = por %p112, %p113
      %p115 = scmp.ne.s32.totalorder %s104, %s105
      %p116 = scmp.eq.s32.totalorder %s21, 0
      %p117 = por %p115, %p116
      %p118 = scmp.ne.s32.totalorder %s104, %s105
      %p119 = scmp.eq.s32.totalorder %s22, 15
      %p120 = por %p118, %p119
      %p122 = scmp.ne.s32.totalorder %s105, %s121
      %p123 = scmp.eq.s32.totalorder %s22, 0
      %p124 = por %p122, %p123
      %s125 = ssub.s32 %s23, %s35
      %p126 = scmp.eq.s32.totalorder %s125, 0
      %s128 = sadd.s32 %s127, 1
      %s129 = scalar_select %p126, %s127, %s128
      %p132 = pneg %p126
      %p133 = scmp.eq.s32.totalorder %s16, 15
      %p134 = por %p132, %p133
      %p135 = scmp.ne.s32.totalorder %s127, %s130
      %p136 = scmp.eq.s32.totalorder %s16, 0
      %p137 = por %p135, %p136
      %p138 = scmp.ne.s32.totalorder %s127, %s130
      %p139 = scmp.eq.s32.totalorder %s21, 15
      %p140 = por %p138, %p139
      %p141 = scmp.ne.s32.totalorder %s130, %s131
      %p142 = scmp.eq.s32.totalorder %s21, 0
      %p143 = por %p141, %p142
      %p144 = scmp.ne.s32.totalorder %s130, %s131
      %p145 = scmp.eq.s32.totalorder %s22, 15
      %p146 = por %p144, %p145
      %p148 = scmp.ne.s32.totalorder %s131, %s147
      %p149 = scmp.eq.s32.totalorder %s22, 0
      %p150 = por %p148, %p149
      %s151 = ssub.s32 %s23, %s35
      %s152 = ssub.s32 %s24, %s31
      %s153 = sor.u32 %s151, %s152
      %p154 = scmp.eq.s32.totalorder %s153, 0
      %s156 = sadd.s32 %s155, 1
      %s157 = scalar_select %p154, %s155, %s156
      %p160 = pneg %p154
      %p161 = scmp.eq.s32.totalorder %s16, 15
      %p162 = por %p160, %p161
      %p163 = scmp.ne.s32.totalorder %s155, %s158
      %p164 = scmp.eq.s32.totalorder %s16, 0
      %p165 = por %p163, %p164
      %p166 = scmp.ne.s32.totalorder %s155, %s158
      %p167 = scmp.eq.s32.totalorder %s21, 15
      %p168 = por %p166, %p167
      %p169 = scmp.ne.s32.totalorder %s158, %s159
      %p170 = scmp.eq.s32.totalorder %s21, 0
      %p171 = por %p169, %p170
      %p172 = scmp.ne.s32.totalorder %s158, %s159
      %p173 = scmp.eq.s32.totalorder %s22, 15
      %p174 = por %p172, %p173
      %p176 = scmp.ne.s32.totalorder %s159, %s175
      %p177 = scmp.eq.s32.totalorder %s22, 0
      %p178 = por %p176, %p177
      %p179 = scmp.le.s32.totalorder 1, %s16
      %p180 = scmp.lt.s32.totalorder %s16, 17
      %p181 = pnand %p179, %p180
      %p182 = pneg %p181
      // Predicated region
      $region9: #{hash_grid_encode.1} parent=5 // pred_check
        _
      $region10: #{hash_grid_encode.1} parent=5 // pred_check_branch
        %184 = sbr.rel (%p181) target = $region12
      $region11: #{hash_grid_encode.1} parent=5 // pred_region
        %s185 = ssub.s32 %s16, 1
        // Predicated region
        $region13: #{hash_grid_encode.1} parent=11 // pred_check
          %p186 = pneg %p49
        $region14: #{hash_grid_encode.1} parent=11 // pred_check_branch
          %188 = sbr.rel (%p186) target = $region16
        $region15: #{hash_grid_encode.1} parent=11 // pred_region
          %s190 = ssub.s32 16, 16
          %191 = vsyncadd [#allocation10], %s190
          %194 = dma.hbm_to_smem %s0, 16, [#allocation8], [#allocation10]
        $region16: #{hash_grid_encode.1} parent=11 // pred_fallthru
          _
        // Predicated region
        $region17: #{hash_grid_encode.1} parent=11 // pred_check
          %p195 = pneg %p70
        $region18: #{hash_grid_encode.1} parent=11 // pred_check_branch
          %197 = sbr.rel (%p195) target = $region20
        $region19: #{hash_grid_encode.1} parent=11 // pred_region
          %s199 = ssub.s32 16, 16
          %200 = vsyncadd [#allocation12], %s199
          %203 = dma.hbm_to_smem %s1, 16, [#allocation11], [#allocation12]
        $region20: #{hash_grid_encode.1} parent=11 // pred_fallthru
          _
        // Predicated region
        $region21: #{hash_grid_encode.1} parent=11 // pred_check
          %p204 = pneg %p91
        $region22: #{hash_grid_encode.1} parent=11 // pred_check_branch
          %206 = sbr.rel (%p204) target = $region24
        $region23: #{hash_grid_encode.1} parent=11 // pred_region
          %s208 = ssub.s32 16, 16
          %209 = vsyncadd [#allocation12], %s208
          %212 = dma.hbm_to_smem %s2, 16, [#allocation13], [#allocation12]
        $region24: #{hash_grid_encode.1} parent=11 // pred_fallthru
          _
        // Predicated region
        $region25: #{hash_grid_encode.1} parent=11 // pred_check
          %p213 = pneg %p117
        $region26: #{hash_grid_encode.1} parent=11 // pred_check_branch
          %215 = sbr.rel (%p213) target = $region28
        $region27: #{hash_grid_encode.1} parent=11 // pred_region
          %s216 = smul.u32 2, %s26
          %p217 = scmp.lt.s32.totalorder %s216, 1
          %s218 = scalar_select %p217, %s216, 1
          %s219 = smul.addr %s218, 4
          %s220 = scalar_lea.vmem %s3, %s219
          %s221 = smul.u32 2, %s26
        $region28: #{hash_grid_encode.1} parent=11 // pred_fallthru
          _
      $region12: #{hash_grid_encode.1} parent=5 // pred_fallthru
        _
      %p222 = scmp.lt.s32.totalorder %s16, 16
      // Predicated region
      $region29: #{hash_grid_encode.1} parent=5 // pred_check
        %p223 = pneg %p222
      $region30: #{hash_grid_encode.1} parent=5 // pred_check_branch
        %225 = sbr.rel (%p223) target = $region32
      $region31: #{hash_grid_encode.1} parent=5 // pred_region
        // Predicated region
        $region33: #{hash_grid_encode.1} parent=31 // pred_check
          %p226 = pneg %p137
        $region34: #{hash_grid_encode.1} parent=31 // pred_check_branch
          %228 = sbr.rel (%p226) target = $region36
        $region35: #{hash_grid_encode.1} parent=31 // pred_region
          %s229 = sand.u32 %s127, 1
          %s230 = scalar_lea.sflag [#allocation9], %s229
          %s231 = sand.u32 %s127, 1
          %s232 = smul.addr %s231, 8192
          %s233 = scalar_lea.vmem [#allocation14], %s232
          %s235 = ssub.s32 131072, 131072
          %236 = vsyncadd %s230, %s235
          %s237 = smul.addr %s23, 1024
          %s238 = smul.addr %s237, 128
          %s239 = scalar_lea.hbm %s4, %s238
          %s240 = sshll.u32 %s233, 4
          %s241 = int_to_ptr.vmem [resolvable:$true] %s240
          %246 = dma.hbm_to_vmem [thread:$0]  %s239, 131072, %s241, %s230, 128, 128, 8
        $region36: #{hash_grid_encode.1} parent=31 // pred_fallthru
          _
      $region32: #{hash_grid_encode.1} parent=5 // pred_fallthru
        _
      %p247 = scmp.le.s32.totalorder 1, %s16
      %p248 = scmp.lt.s32.totalorder %s16, 17
      %p249 = pnand %p247, %p248
      %p250 = pneg %p249
      // Predicated region
      $region37: #{hash_grid_encode.1} parent=5 // pred_check
        _
      $region38: #{hash_grid_encode.1} parent=5 // pred_check_branch
        %252 = sbr.rel (%p249) target = $region40
      $region39: #{hash_grid_encode.1} parent=5 // pred_region
        %s253 = ssub.s32 %s16, 1
        // Predicated region
        $region41: #{hash_grid_encode.1} parent=39 // pred_check
          %p254 = pneg %p49
        $region42: #{hash_grid_encode.1} parent=39 // pred_check_branch
          %256 = sbr.rel (%p254) target = $region44
        $region43: #{hash_grid_encode.1} parent=39 // pred_region
          %257 = dma.done [#allocation10], 16
        $region44: #{hash_grid_encode.1} parent=39 // pred_fallthru
          _
        // Predicated region
        $region45: #{hash_grid_encode.1} parent=39 // pred_check
          %p258 = pneg %p70
        $region46: #{hash_grid_encode.1} parent=39 // pred_check_branch
          %260 = sbr.rel (%p258) target = $region48
        $region47: #{hash_grid_encode.1} parent=39 // pred_region
          %261 = dma.done [#allocation12], 16
        $region48: #{hash_grid_encode.1} parent=39 // pred_fallthru
          _
        // Predicated region
        $region49: #{hash_grid_encode.1} parent=39 // pred_check
          %p262 = pneg %p91
        $region50: #{hash_grid_encode.1} parent=39 // pred_check_branch
          %264 = sbr.rel (%p262) target = $region52
        $region51: #{hash_grid_encode.1} parent=39 // pred_region
          %265 = dma.done [#allocation12], 16
        $region52: #{hash_grid_encode.1} parent=39 // pred_fallthru
          _
        %s266 = sand.u32 %s130, 1
        %s267 = scalar_lea.sflag [#allocation9], %s266
        %s268 = sand.u32 %s130, 1
        %s269 = smul.addr %s268, 8192
        %s270 = scalar_lea.vmem [#allocation14], %s269
        // Predicated region
        $region53: #{hash_grid_encode.1} parent=39 // pred_check
          %p271 = pneg %p143
        $region54: #{hash_grid_encode.1} parent=39 // pred_check_branch
          %273 = sbr.rel (%p271) target = $region56
        $region55: #{hash_grid_encode.1} parent=39 // pred_region
          %274 = dma.done %s267, 131072
        $region56: #{hash_grid_encode.1} parent=39 // pred_fallthru
          _
        %275 = sfence
        %p276 = pneg %p49
        %p277 = pneg %p46
        %p278 = pneg %p70
        %p279 = pneg %p67
        %p280 = pneg %p91
        %p281 = pneg %p88
        %s282 = smul.u32 2, %s26
        %p283 = scmp.lt.s32.totalorder %s282, 1
        %s284 = scalar_select %p283, %s282, 1
        %s285 = smul.addr %s284, 4
        %s286 = scalar_lea.vmem %s3, %s285
        %p287 = pneg %p117
        %p288 = pneg %p114
        %s289 = sand.u32 %s130, 1
        %s290 = scalar_lea.sflag [#allocation9], %s289
        %s291 = sand.u32 %s130, 1
        %s292 = smul.addr %s291, 8192
        %s293 = scalar_lea.vmem [#allocation14], %s292
        %p294 = pneg %p143
        %p295 = pneg %p140
        %p296 = pneg %p171
        %p297 = pneg %p168
        %s298 = smul.u32 32, %s26
        %p299 = scmp.lt.s32.totalorder %s25, 15
        %s300 = scalar_select %p299, %s25, 15
        %p301 = scmp.lt.s32.totalorder %s298, 31
        %s302 = scalar_select %p301, %s298, 31
        %s303 = smul.addr %s300, 32
        %s304 = sadd.s32 %s302, %s303
        %s305 = smul.addr %s304, 8
        %s306 = scalar_lea.vmem %s5, %s305
        %s307 = smul.u32 2, %s26
        %p308 = scmp.lt.s32.totalorder %s307, 1
        %s309 = scalar_select %p308, %s307, 1
        %s310 = smul.addr %s309, 4
        %s311 = scalar_lea.vmem %s3, %s310
        %s312 = smul.u32 2, %s26
        %s313 = smul.u32 32, %s26
        %p314 = scmp.lt.s32.totalorder %s25, 15
        %s315 = scalar_select %p314, %s25, 15
        %p316 = scmp.lt.s32.totalorder %s313, 31
        %s317 = scalar_select %p316, %s313, 31
        %s318 = smul.addr %s315, 32
        %s319 = sadd.s32 %s317, %s318
        %s320 = smul.addr %s319, 8
        %s321 = scalar_lea.vmem %s5, %s320
        %s322 = smul.u32 32, %s26
        %s323 = sld [smem:[#allocation8 + %s25]]
        %s324 = sld [smem:[#allocation11 + %s25]]
        %s325 = sld [smem:[#allocation13 + %s25]]
        %v326 = vld [vmem:[%s311] sm:$0x77]
        %v327 = vstv %s323
        %v328 = vmul.f32 %v326, %v327
        %v329 = vadd.f32 %v328, 0.5
        %v330 = vfloor.f32 %v329
        %v331 = vcvt.f32.s32.to.zero.pseudo %v330
        %v332 = vsub.f32 %v329, %v330
        %v333 = vsub.f32 1.0, %v332
        %v335 = vrot.slane %v333, 5
        %v336 = vrot.slane %v335, 4
        %v338 = vmul.f32 %v333, %v336
        %v339 = vrot.slane %v333, 6
        %v340 = vrot.slane %v339, 4
        %v342 = vmul.f32 %v338, %v340
        %v343 = vmul.u32 %v331, 2654435761
        %v344 = vrot.slane %v343, 5
        %v345 = vrot.slane %v344, 4
        %v346 = vxor.u32 %v331, %v345
        %v347 = vmul.u32 %v331, 805459861
        %v348 = vrot.slane %v347, 6
        %v349 = vrot.slane %v348, 4
        %v350 = vxor.u32 %v346, %v349
        %v351 = vstv %s324
        %v352 = vmul.u32 %v331, %v351
        %v353 = vrot.slane %v352, 5
        %v354 = vrot.slane %v353, 4
        %v355 = vadd.s32 %v331, %v354
        %s356 = smul.u32 %s324, %s324
        %v357 = vstv %s356
        %v358 = vmul.u32 %v331, %v357
        %v359 = vrot.slane %v358, 6
        %v360 = vrot.slane %v359, 4
        %v361 = vadd.s32 %v355, %v360
        %p362 = scmp.eq.s32.totalorder %s325, 1
        %s363 = scalar_select %p362, 1, 0
        %v364 = vstv %s363
        %vm365 = vcmp.eq.s32.totalorder %v364, 1
        %v366 = vsel %vm365, %v350, %v361
        %v367 = vand.u32 %v366, 524287
        %v368 = vadd.s32 %v331, 1
        %v369 = vmul.f32 %v332, %v336
        %v370 = vmul.f32 %v369, %v340
        %v371 = vxor.u32 %v368, %v345
        %v372 = vxor.u32 %v371, %v349
        %v373 = vadd.s32 %v368, %v354
        %v374 = vadd.s32 %v373, %v360
        %v375 = vsel %vm365, %v372, %v374
        %v376 = vand.u32 %v375, 524287
        %v378 = vrot.slane %v332, 5
        %v379 = vrot.slane %v378, 4
        %v381 = vmul.f32 %v333, %v379
        %v382 = vmul.f32 %v381, %v340
        %v383 = vmul.u32 %v368, 2654435761
        %v384 = vrot.slane %v383, 5
        %v385 = vrot.slane %v384, 4
        %v386 = vxor.u32 %v331, %v385
        %v387 = vxor.u32 %v386, %v349
        %v388 = vmul.u32 %v368, %v351
        %v389 = vrot.slane %v388, 5
        %v390 = vrot.slane %v389, 4
        %v391 = vadd.s32 %v331, %v390
        %v392 = vadd.s32 %v391, %v360
        %v393 = vsel %vm365, %v387, %v392
        %v394 = vand.u32 %v393, 524287
        %v395 = vmul.f32 %v332, %v379
        %v396 = vmul.f32 %v395, %v340
        %v397 = vxor.u32 %v368, %v385
        %v398 = vxor.u32 %v397, %v349
        %v399 = vadd.s32 %v368, %v390
        %v400 = vadd.s32 %v399, %v360
        %v401 = vsel %vm365, %v398, %v400
        %v402 = vand.u32 %v401, 524287
        %v403 = vrot.slane %v332, 6
        %v404 = vrot.slane %v403, 4
        %v406 = vmul.f32 %v338, %v404
        %v407 = vmul.u32 %v368, 805459861
        %v408 = vrot.slane %v407, 6
        %v409 = vrot.slane %v408, 4
        %v410 = vxor.u32 %v346, %v409
        %v411 = vmul.u32 %v368, %v357
        %v412 = vrot.slane %v411, 6
        %v413 = vrot.slane %v412, 4
        %v414 = vadd.s32 %v355, %v413
        %v415 = vsel %vm365, %v410, %v414
        %v416 = vand.u32 %v415, 524287
        %v417 = vmul.f32 %v369, %v404
        %v418 = vxor.u32 %v371, %v409
        %v419 = vadd.s32 %v373, %v413
        %v420 = vsel %vm365, %v418, %v419
        %v421 = vand.u32 %v420, 524287
        %v422 = vmul.f32 %v381, %v404
        %v423 = vxor.u32 %v386, %v409
        %v424 = vadd.s32 %v391, %v413
        %v425 = vsel %vm365, %v423, %v424
        %v426 = vand.u32 %v425, 524287
        %v427 = vmul.f32 %v395, %v404
        %v428 = vxor.u32 %v397, %v409
        %v429 = vadd.s32 %v399, %v413
        %v430 = vsel %vm365, %v428, %v429
        %v431 = vand.u32 %v430, 524287
        %v432 = vlaneseq
        %v433 = vshrl.u32 %v432, 7
        %v434 = vsub.s32 0, %v433
        %v435 = vrot.slane %v367, %v434
        %v436 = vlaneseq
        %v437 = vshrl.u32 %v436, 7
        %v438 = vsub.s32 4, %v437
        %v439 = vrot.slane %v367, %v438
        %v440 = vlaneseq
        %v441 = vshrl.u32 %v440, 7
        %v442 = vsub.s32 0, %v441
        %v443 = vrot.slane %v376, %v442
        %v444 = vlaneseq
        %v445 = vshrl.u32 %v444, 7
        %v446 = vsub.s32 4, %v445
        %v447 = vrot.slane %v376, %v446
        %v448 = vlaneseq
        %v449 = vshrl.u32 %v448, 7
        %v450 = vsub.s32 0, %v449
        %v451 = vrot.slane %v394, %v450
        %v452 = vlaneseq
        %v453 = vshrl.u32 %v452, 7
        %v454 = vsub.s32 4, %v453
        %v455 = vrot.slane %v394, %v454
        %v456 = vlaneseq
        %v457 = vshrl.u32 %v456, 7
        %v458 = vsub.s32 0, %v457
        %v459 = vrot.slane %v402, %v458
        %v460 = vlaneseq
        %v461 = vshrl.u32 %v460, 7
        %v462 = vsub.s32 4, %v461
        %v463 = vrot.slane %v402, %v462
        %v464 = vlaneseq
        %v465 = vshrl.u32 %v464, 7
        %v466 = vsub.s32 0, %v465
        %v467 = vrot.slane %v416, %v466
        %v468 = vlaneseq
        %v469 = vshrl.u32 %v468, 7
        %v470 = vsub.s32 4, %v469
        %v471 = vrot.slane %v416, %v470
        %v472 = vlaneseq
        %v473 = vshrl.u32 %v472, 7
        %v474 = vsub.s32 0, %v473
        %v475 = vrot.slane %v421, %v474
        %v476 = vlaneseq
        %v477 = vshrl.u32 %v476, 7
        %v478 = vsub.s32 4, %v477
        %v479 = vrot.slane %v421, %v478
        %v480 = vlaneseq
        %v481 = vshrl.u32 %v480, 7
        %v482 = vsub.s32 0, %v481
        %v483 = vrot.slane %v426, %v482
        %v484 = vlaneseq
        %v485 = vshrl.u32 %v484, 7
        %v486 = vsub.s32 4, %v485
        %v487 = vrot.slane %v426, %v486
        %v488 = vlaneseq
        %v489 = vshrl.u32 %v488, 7
        %v490 = vsub.s32 0, %v489
        %v491 = vrot.slane %v431, %v490
        %v492 = vlaneseq
        %v493 = vshrl.u32 %v492, 7
        %v494 = vsub.s32 4, %v493
        %v495 = vrot.slane %v431, %v494
        %vm496 = vcmask 1040384
        %v497 = vsel %vm496, %v435, %v443
        %v498 = vsel %vm496, %v439, %v447
        %vm499 = vcmask 1041408
        %v500 = vsel %vm499, %v497, %v451
        %v501 = vsel %vm499, %v498, %v455
        %vm502 = vcmask 1042432
        %v503 = vsel %vm502, %v500, %v459
        %v504 = vsel %vm502, %v501, %v463
        %vm505 = vcmask 1043456
        %v506 = vsel %vm505, %v503, %v467
        %v507 = vsel %vm505, %v504, %v471
        %vm508 = vcmask 1044480
        %v509 = vsel %vm508, %v506, %v475
        %v510 = vsel %vm508, %v507, %v479
        %vm511 = vcmask 1045504
        %v512 = vsel %vm511, %v509, %v483
        %v513 = vsel %vm511, %v510, %v487
        %vm514 = vcmask 1046528
        %v515 = vsel %vm514, %v512, %v491
        %v516 = vsel %vm514, %v513, %v495
        %v518 = vlaneseq
        %v519 = vshrl.u32 %v518, 7
        %v520 = vsub.s32 0, %v519
        %v521 = vrot.slane %v342, %v520
        %v522 = vlaneseq
        %v523 = vshrl.u32 %v522, 7
        %v524 = vsub.s32 4, %v523
        %v525 = vrot.slane %v342, %v524
        %v529 = vlaneseq
        %v530 = vshrl.u32 %v529, 7
        %v531 = vsub.s32 0, %v530
        %v532 = vrot.slane %v370, %v531
        %v533 = vlaneseq
        %v534 = vshrl.u32 %v533, 7
        %v535 = vsub.s32 4, %v534
        %v536 = vrot.slane %v370, %v535
        %v540 = vlaneseq
        %v541 = vshrl.u32 %v540, 7
        %v542 = vsub.s32 0, %v541
        %v543 = vrot.slane %v382, %v542
        %v544 = vlaneseq
        %v545 = vshrl.u32 %v544, 7
        %v546 = vsub.s32 4, %v545
        %v547 = vrot.slane %v382, %v546
        %v551 = vlaneseq
        %v552 = vshrl.u32 %v551, 7
        %v553 = vsub.s32 0, %v552
        %v554 = vrot.slane %v396, %v553
        %v555 = vlaneseq
        %v556 = vshrl.u32 %v555, 7
        %v557 = vsub.s32 4, %v556
        %v558 = vrot.slane %v396, %v557
        %v562 = vlaneseq
        %v563 = vshrl.u32 %v562, 7
        %v564 = vsub.s32 0, %v563
        %v565 = vrot.slane %v406, %v564
        %v566 = vlaneseq
        %v567 = vshrl.u32 %v566, 7
        %v568 = vsub.s32 4, %v567
        %v569 = vrot.slane %v406, %v568
        %v573 = vlaneseq
        %v574 = vshrl.u32 %v573, 7
        %v575 = vsub.s32 0, %v574
        %v576 = vrot.slane %v417, %v575
        %v577 = vlaneseq
        %v578 = vshrl.u32 %v577, 7
        %v579 = vsub.s32 4, %v578
        %v580 = vrot.slane %v417, %v579
        %v584 = vlaneseq
        %v585 = vshrl.u32 %v584, 7
        %v586 = vsub.s32 0, %v585
        %v587 = vrot.slane %v422, %v586
        %v588 = vlaneseq
        %v589 = vshrl.u32 %v588, 7
        %v590 = vsub.s32 4, %v589
        %v591 = vrot.slane %v422, %v590
        %v595 = vlaneseq
        %v596 = vshrl.u32 %v595, 7
        %v597 = vsub.s32 0, %v596
        %v598 = vrot.slane %v427, %v597
        %v599 = vlaneseq
        %v600 = vshrl.u32 %v599, 7
        %v601 = vsub.s32 4, %v600
        %v602 = vrot.slane %v427, %v601
        %v605 = vsel %vm496, %v521, %v532
        %v606 = vsel %vm496, %v525, %v536
        %v607 = vsel %vm499, %v605, %v543
        %v608 = vsel %vm499, %v606, %v547
        %v609 = vsel %vm502, %v607, %v554
        %v610 = vsel %vm502, %v608, %v558
        %v611 = vsel %vm505, %v609, %v565
        %v612 = vsel %vm505, %v610, %v569
        %v613 = vsel %vm508, %v611, %v576
        %v614 = vsel %vm508, %v612, %v580
        %v615 = vsel %vm511, %v613, %v587
        %v616 = vsel %vm511, %v614, %v591
        %v617 = vsel %vm514, %v615, %v598
        %v618 = vsel %vm514, %v616, %v602
        %619 = vst [vmem:[#allocation3] sm:$0xff] %v515
        %620 = vst [vmem:[#allocation3 + $0x8] sm:$0xff] %v516
        %621 = vst [vmem:[#allocation4] sm:$0xff] %v617
        %622 = vst [vmem:[#allocation4 + $0x8] sm:$0xff] %v618
        // Predicated region
        $region57: #{hash_grid_encode.1} parent=39 // pred_check
          _
        $region58: #{hash_grid_encode.1} parent=39 // pred_check_branch
          %624 = sbr.rel target = $region60
        $region59: #{hash_grid_encode.1} parent=39 // pred_region
          %625 = sst [smem:[#allocation17]] [#allocation16]
          %626 = sst [smem:[#allocation18]] [#allocation15]
        $region60: #{hash_grid_encode.1} parent=39 // pred_fallthru
          _
        %628 = shalt.err (0)
        %s630 = sshll.u32 [#allocation3], 4
        %s631 = int_to_ptr.vmem [resolvable:$true] %s630
        %633 = dma.vmem_to_smem %s631, 256, [#allocation5], [#allocation7]
        %s634 = scalar_lea.sflag [#allocation7], 1
        // Predicated region
        $region61: #{hash_grid_encode.1} parent=39 // pred_check
          _
        $region62: #{hash_grid_encode.1} parent=39 // pred_check_branch
          %636 = sbr.rel target = $region64
        $region63: #{hash_grid_encode.1} parent=39 // pred_region
          %637 = sst [smem:[#allocation17]] [#allocation20]
          %638 = sst [smem:[#allocation18]] [#allocation19]
        $region64: #{hash_grid_encode.1} parent=39 // pred_fallthru
          _
        %640 = shalt.err (0)
        %s642 = sshll.u32 [#allocation4], 4
        %s643 = int_to_ptr.vmem [resolvable:$true] %s642
        %645 = dma.vmem_to_smem %s643, 256, [#allocation6], %s634
        %s646 = smul.u32 8, 1
        %s647 = smul.u32 %s646, 2
        %s648 = sshll.u32 %s647, 4
        %649 = dma.done [#allocation7], %s648
        %650 = sfence
        %s651 = sshll.u32 %s647, 4
        %652 = dma.done %s634, %s651
        %653 = sfence
        %v654 = vlaneseq
        %v655 = vand.u32 %v654, 127
        %v656 = vshra.s32 %v655, 1
        loop: start=0, step=1, limit=256
        $region65: #{hash_grid_encode.1} parent=39 // loop_pre_header
          _
        $region66: #{hash_grid_encode.1} parent=39 // loop_header
          %s658 = sphi 0, %s662
          %p659 = scmp.ge.s32.totalorder %s658, 256
        $region67: #{hash_grid_encode.1} parent=39 // loop_header_branch
          %661 = sbr.rel (%p659) target = $region71
        $region68: #{hash_grid_encode.1} parent=39 // loop_body
          %s663 = sshra.s32 %s658, 7
          %s664 = sand.u32 %s658, 127
          %s665 = smul.u32 %s663, 1024
          %s666 = sshra.s32 %s658, 7
          %s667 = sand.u32 %s658, 127
          %s668 = sadd.s32 %s665, %s667
          %s669 = sld [smem:[#allocation5 + %s668]]
          %s670 = sld [smem:[#allocation6 + %s668]]
          %s671 = sshra.s32 %s669, 6
          %s672 = sand.u32 %s669, 63
          %s673 = scalar_lea.vmem %s270, %s671 [#allocation14]
          %v674 = vld [vmem:[%s673] sm:$0x1]
          %v675 = vstv %s672
          %vm676 = vcmp.eq.s32.totalorder %v656, %v675
          %v677 = vstv %s670
          %v678 = vmul.f32 %v674, %v677
          %v679 = vsel %vm676, %v678, 0.0
          %v680 = vadd.f32 %v679, 0.0
          %s681 = sadd.s32 128, %s667
          %s682 = sadd.s32 %s665, %s681
          %s683 = sld [smem:[#allocation5 + %s682]]
          %s684 = sld [smem:[#allocation6 + %s682]]
          %s685 = sshra.s32 %s683, 6
          %s686 = sand.u32 %s683, 63
          %s687 = scalar_lea.vmem %s270, %s685 [#allocation14]
          %v688 = vld [vmem:[%s687] sm:$0x1]
          %v689 = vstv %s686
          %vm690 = vcmp.eq.s32.totalorder %v656, %v689
          %v691 = vstv %s684
          %v692 = vmul.f32 %v688, %v691
          %v693 = vsel %vm690, %v692, 0.0
          %v694 = vadd.f32 %v680, %v693
          %s695 = sadd.s32 256, %s667
          %s696 = sadd.s32 %s665, %s695
          %s697 = sld [smem:[#allocation5 + %s696]]
          %s698 = sld [smem:[#allocation6 + %s696]]
          %s699 = sshra.s32 %s697, 6
          %s700 = sand.u32 %s697, 63
          %s701 = scalar_lea.vmem %s270, %s699 [#allocation14]
          %v702 = vld [vmem:[%s701] sm:$0x1]
          %v703 = vstv %s700
          %vm704 = vcmp.eq.s32.totalorder %v656, %v703
          %v705 = vstv %s698
          %v706 = vmul.f32 %v702, %v705
          %v707 = vsel %vm704, %v706, 0.0
          %v708 = vadd.f32 %v694, %v707
          %s709 = sadd.s32 384, %s667
          %s710 = sadd.s32 %s665, %s709
          %s711 = sld [smem:[#allocation5 + %s710]]
          %s712 = sld [smem:[#allocation6 + %s710]]
          %s713 = sshra.s32 %s711, 6
          %s714 = sand.u32 %s711, 63
          %s715 = scalar_lea.vmem %s270, %s713 [#allocation14]
          %v716 = vld [vmem:[%s715] sm:$0x1]
          %v717 = vstv %s714
          %vm718 = vcmp.eq.s32.totalorder %v656, %v717
          %v719 = vstv %s712
          %v720 = vmul.f32 %v716, %v719
          %v721 = vsel %vm718, %v720, 0.0
          %v722 = vadd.f32 %v708, %v721
          %s723 = sadd.s32 512, %s667
          %s724 = sadd.s32 %s665, %s723
          %s725 = sld [smem:[#allocation5 + %s724]]
          %s726 = sld [smem:[#allocation6 + %s724]]
          %s727 = sshra.s32 %s725, 6
          %s728 = sand.u32 %s725, 63
          %s729 = scalar_lea.vmem %s270, %s727 [#allocation14]
          %v730 = vld [vmem:[%s729] sm:$0x1]
          %v731 = vstv %s728
          %vm732 = vcmp.eq.s32.totalorder %v656, %v731
          %v733 = vstv %s726
          %v734 = vmul.f32 %v730, %v733
          %v735 = vsel %vm732, %v734, 0.0
          %v736 = vadd.f32 %v722, %v735
          %s737 = sadd.s32 640, %s667
          %s738 = sadd.s32 %s665, %s737
          %s739 = sld [smem:[#allocation5 + %s738]]
          %s740 = sld [smem:[#allocation6 + %s738]]
          %s741 = sshra.s32 %s739, 6
          %s742 = sand.u32 %s739, 63
          %s743 = scalar_lea.vmem %s270, %s741 [#allocation14]
          %v744 = vld [vmem:[%s743] sm:$0x1]
          %v745 = vstv %s742
          %vm746 = vcmp.eq.s32.totalorder %v656, %v745
          %v747 = vstv %s740
          %v748 = vmul.f32 %v744, %v747
          %v749 = vsel %vm746, %v748, 0.0
          %v750 = vadd.f32 %v736, %v749
          %s751 = sadd.s32 768, %s667
          %s752 = sadd.s32 %s665, %s751
          %s753 = sld [smem:[#allocation5 + %s752]]
          %s754 = sld [smem:[#allocation6 + %s752]]
          %s755 = sshra.s32 %s753, 6
          %s756 = sand.u32 %s753, 63
          %s757 = scalar_lea.vmem %s270, %s755 [#allocation14]
          %v758 = vld [vmem:[%s757] sm:$0x1]
          %v759 = vstv %s756
          %vm760 = vcmp.eq.s32.totalorder %v656, %v759
          %v761 = vstv %s754
          %v762 = vmul.f32 %v758, %v761
          %v763 = vsel %vm760, %v762, 0.0
          %v764 = vadd.f32 %v750, %v763
          %s765 = sadd.s32 896, %s667
          %s766 = sadd.s32 %s665, %s765
          %s767 = sld [smem:[#allocation5 + %s766]]
          %s768 = sld [smem:[#allocation6 + %s766]]
          %s769 = sshra.s32 %s767, 6
          %s770 = sand.u32 %s767, 63
          %s771 = scalar_lea.vmem %s270, %s769 [#allocation14]
          %v772 = vld [vmem:[%s771] sm:$0x1]
          %v773 = vstv %s770
          %vm774 = vcmp.eq.s32.totalorder %v656, %v773
          %v775 = vstv %s768
          %v776 = vmul.f32 %v772, %v775
          %v777 = vsel %vm774, %v776, 0.0
          %v778 = vadd.f32 %v764, %v777
          %s779 = scalar_lea.vmem [#allocation2], %s658
          %780 = vst [vmem:[%s779] sm:$0x1] %v778
        $region69: #{hash_grid_encode.1} parent=39 // loop_footer
          %s662 = sadd.s32 1, %s658
        $region70: #{hash_grid_encode.1} parent=39 // loop_footer_branch
          %657 = sbr.rel target = $region66
        $region71: #{hash_grid_encode.1} parent=39 // loop_exit
          _
        %v781 = vld [vmem:[#allocation2] sm:$0xff]
        %v782 = vld [vmem:[#allocation2 + $0x8] sm:$0xff]
        %v783 = vld [vmem:[#allocation2 + $0x10] sm:$0xff]
        %v784 = vld [vmem:[#allocation2 + $0x18] sm:$0xff]
        %v785 = vld [vmem:[#allocation2 + $0x20] sm:$0xff]
        %v786 = vld [vmem:[#allocation2 + $0x28] sm:$0xff]
        %v787 = vld [vmem:[#allocation2 + $0x30] sm:$0xff]
        %v788 = vld [vmem:[#allocation2 + $0x38] sm:$0xff]
        %v789 = vld [vmem:[#allocation2 + $0x40] sm:$0xff]
        %v790 = vld [vmem:[#allocation2 + $0x48] sm:$0xff]
        %v791 = vld [vmem:[#allocation2 + $0x50] sm:$0xff]
        %v792 = vld [vmem:[#allocation2 + $0x58] sm:$0xff]
        %v793 = vld [vmem:[#allocation2 + $0x60] sm:$0xff]
        %v794 = vld [vmem:[#allocation2 + $0x68] sm:$0xff]
        %v795 = vld [vmem:[#allocation2 + $0x70] sm:$0xff]
        %v796 = vld [vmem:[#allocation2 + $0x78] sm:$0xff]
        %v797 = vld [vmem:[#allocation2 + $0x80] sm:$0xff]
        %v798 = vld [vmem:[#allocation2 + $0x88] sm:$0xff]
        %v799 = vld [vmem:[#allocation2 + $0x90] sm:$0xff]
        %v800 = vld [vmem:[#allocation2 + $0x98] sm:$0xff]
        %v801 = vld [vmem:[#allocation2 + $0xa0] sm:$0xff]
        %v802 = vld [vmem:[#allocation2 + $0xa8] sm:$0xff]
        %v803 = vld [vmem:[#allocation2 + $0xb0] sm:$0xff]
        %v804 = vld [vmem:[#allocation2 + $0xb8] sm:$0xff]
        %v805 = vld [vmem:[#allocation2 + $0xc0] sm:$0xff]
        %v806 = vld [vmem:[#allocation2 + $0xc8] sm:$0xff]
        %v807 = vld [vmem:[#allocation2 + $0xd0] sm:$0xff]
        %v808 = vld [vmem:[#allocation2 + $0xd8] sm:$0xff]
        %v809 = vld [vmem:[#allocation2 + $0xe0] sm:$0xff]
        %v810 = vld [vmem:[#allocation2 + $0xe8] sm:$0xff]
        %v811 = vld [vmem:[#allocation2 + $0xf0] sm:$0xff]
        %v812 = vld [vmem:[#allocation2 + $0xf8] sm:$0xff]
        %813 = vadd.xlane.f32.xlu0 %v781
        %v814 = vpop.xlane.xlu0 %813
        %815 = vadd.xlane.f32.xlu0 %v782
        %v816 = vpop.xlane.xlu0 %815
        %817 = vadd.xlane.f32.xlu0 %v783
        %v818 = vpop.xlane.xlu0 %817
        %819 = vadd.xlane.f32.xlu0 %v784
        %v820 = vpop.xlane.xlu0 %819
        %821 = vadd.xlane.f32.xlu0 %v785
        %v822 = vpop.xlane.xlu0 %821
        %823 = vadd.xlane.f32.xlu0 %v786
        %v824 = vpop.xlane.xlu0 %823
        %825 = vadd.xlane.f32.xlu0 %v787
        %v826 = vpop.xlane.xlu0 %825
        %827 = vadd.xlane.f32.xlu0 %v788
        %v828 = vpop.xlane.xlu0 %827
        %829 = vadd.xlane.f32.xlu0 %v789
        %v830 = vpop.xlane.xlu0 %829
        %831 = vadd.xlane.f32.xlu0 %v790
        %v832 = vpop.xlane.xlu0 %831
        %833 = vadd.xlane.f32.xlu0 %v791
        %v834 = vpop.xlane.xlu0 %833
        %835 = vadd.xlane.f32.xlu0 %v792
        %v836 = vpop.xlane.xlu0 %835
        %837 = vadd.xlane.f32.xlu0 %v793
        %v838 = vpop.xlane.xlu0 %837
        %839 = vadd.xlane.f32.xlu0 %v794
        %v840 = vpop.xlane.xlu0 %839
        %841 = vadd.xlane.f32.xlu0 %v795
        %v842 = vpop.xlane.xlu0 %841
        %843 = vadd.xlane.f32.xlu0 %v796
        %v844 = vpop.xlane.xlu0 %843
        %845 = vadd.xlane.f32.xlu0 %v797
        %v846 = vpop.xlane.xlu0 %845
        %847 = vadd.xlane.f32.xlu0 %v798
        %v848 = vpop.xlane.xlu0 %847
        %849 = vadd.xlane.f32.xlu0 %v799
        %v850 = vpop.xlane.xlu0 %849
        %851 = vadd.xlane.f32.xlu0 %v800
        %v852 = vpop.xlane.xlu0 %851
        %853 = vadd.xlane.f32.xlu0 %v801
        %v854 = vpop.xlane.xlu0 %853
        %855 = vadd.xlane.f32.xlu0 %v802
        %v856 = vpop.xlane.xlu0 %855
        %857 = vadd.xlane.f32.xlu0 %v803
        %v858 = vpop.xlane.xlu0 %857
        %859 = vadd.xlane.f32.xlu0 %v804
        %v860 = vpop.xlane.xlu0 %859
        %861 = vadd.xlane.f32.xlu0 %v805
        %v862 = vpop.xlane.xlu0 %861
        %863 = vadd.xlane.f32.xlu0 %v806
        %v864 = vpop.xlane.xlu0 %863
        %865 = vadd.xlane.f32.xlu0 %v807
        %v866 = vpop.xlane.xlu0 %865
        %867 = vadd.xlane.f32.xlu0 %v808
        %v868 = vpop.xlane.xlu0 %867
        %869 = vadd.xlane.f32.xlu0 %v809
        %v870 = vpop.xlane.xlu0 %869
        %871 = vadd.xlane.f32.xlu0 %v810
        %v872 = vpop.xlane.xlu0 %871
        %873 = vadd.xlane.f32.xlu0 %v811
        %v874 = vpop.xlane.xlu0 %873
        %875 = vadd.xlane.f32.xlu0 %v812
        %v876 = vpop.xlane.xlu0 %875
        %v877 = vand.u32 %v655, 1
        %vm878 = vcmp.eq.s32.totalorder %v877, 0
        %v879 = vsel %vm878, 1, 0
        %vm880 = vcmp.eq.s32.totalorder %v879, 1
        %v881 = vsel %vm880, %v781, 0.0
        %v882 = vsel %vm880, %v782, 0.0
        %v883 = vsel %vm880, %v783, 0.0
        %v884 = vsel %vm880, %v784, 0.0
        %v885 = vsel %vm880, %v785, 0.0
        %v886 = vsel %vm880, %v786, 0.0
        %v887 = vsel %vm880, %v787, 0.0
        %v888 = vsel %vm880, %v788, 0.0
        %v889 = vsel %vm880, %v789, 0.0
        %v890 = vsel %vm880, %v790, 0.0
        %v891 = vsel %vm880, %v791, 0.0
        %v892 = vsel %vm880, %v792, 0.0
        %v893 = vsel %vm880, %v793, 0.0
        %v894 = vsel %vm880, %v794, 0.0
        %v895 = vsel %vm880, %v795, 0.0
        %v896 = vsel %vm880, %v796, 0.0
        %v897 = vsel %vm880, %v797, 0.0
        %v898 = vsel %vm880, %v798, 0.0
        %v899 = vsel %vm880, %v799, 0.0
        %v900 = vsel %vm880, %v800, 0.0
        %v901 = vsel %vm880, %v801, 0.0
        %v902 = vsel %vm880, %v802, 0.0
        %v903 = vsel %vm880, %v803, 0.0
        %v904 = vsel %vm880, %v804, 0.0
        %v905 = vsel %vm880, %v805, 0.0
        %v906 = vsel %vm880, %v806, 0.0
        %v907 = vsel %vm880, %v807, 0.0
        %v908 = vsel %vm880, %v808, 0.0
        %v909 = vsel %vm880, %v809, 0.0
        %v910 = vsel %vm880, %v810, 0.0
        %v911 = vsel %vm880, %v811, 0.0
        %v912 = vsel %vm880, %v812, 0.0
        %913 = vadd.xlane.f32.xlu0 %v881
        %v914 = vpop.xlane.xlu0 %913
        %915 = vadd.xlane.f32.xlu0 %v882
        %v916 = vpop.xlane.xlu0 %915
        %917 = vadd.xlane.f32.xlu0 %v883
        %v918 = vpop.xlane.xlu0 %917
        %919 = vadd.xlane.f32.xlu0 %v884
        %v920 = vpop.xlane.xlu0 %919
        %921 = vadd.xlane.f32.xlu0 %v885
        %v922 = vpop.xlane.xlu0 %921
        %923 = vadd.xlane.f32.xlu0 %v886
        %v924 = vpop.xlane.xlu0 %923
        %925 = vadd.xlane.f32.xlu0 %v887
        %v926 = vpop.xlane.xlu0 %925
        %927 = vadd.xlane.f32.xlu0 %v888
        %v928 = vpop.xlane.xlu0 %927
        %929 = vadd.xlane.f32.xlu0 %v889
        %v930 = vpop.xlane.xlu0 %929
        %931 = vadd.xlane.f32.xlu0 %v890
        %v932 = vpop.xlane.xlu0 %931
        %933 = vadd.xlane.f32.xlu0 %v891
        %v934 = vpop.xlane.xlu0 %933
        %935 = vadd.xlane.f32.xlu0 %v892
        %v936 = vpop.xlane.xlu0 %935
        %937 = vadd.xlane.f32.xlu0 %v893
        %v938 = vpop.xlane.xlu0 %937
        %939 = vadd.xlane.f32.xlu0 %v894
        %v940 = vpop.xlane.xlu0 %939
        %941 = vadd.xlane.f32.xlu0 %v895
        %v942 = vpop.xlane.xlu0 %941
        %943 = vadd.xlane.f32.xlu0 %v896
        %v944 = vpop.xlane.xlu0 %943
        %945 = vadd.xlane.f32.xlu0 %v897
        %v946 = vpop.xlane.xlu0 %945
        %947 = vadd.xlane.f32.xlu0 %v898
        %v948 = vpop.xlane.xlu0 %947
        %949 = vadd.xlane.f32.xlu0 %v899
        %v950 = vpop.xlane.xlu0 %949
        %951 = vadd.xlane.f32.xlu0 %v900
        %v952 = vpop.xlane.xlu0 %951
        %953 = vadd.xlane.f32.xlu0 %v901
        %v954 = vpop.xlane.xlu0 %953
        %955 = vadd.xlane.f32.xlu0 %v902
        %v956 = vpop.xlane.xlu0 %955
        %957 = vadd.xlane.f32.xlu0 %v903
        %v958 = vpop.xlane.xlu0 %957
        %959 = vadd.xlane.f32.xlu0 %v904
        %v960 = vpop.xlane.xlu0 %959
        %961 = vadd.xlane.f32.xlu0 %v905
        %v962 = vpop.xlane.xlu0 %961
        %963 = vadd.xlane.f32.xlu0 %v906
        %v964 = vpop.xlane.xlu0 %963
        %965 = vadd.xlane.f32.xlu0 %v907
        %v966 = vpop.xlane.xlu0 %965
        %967 = vadd.xlane.f32.xlu0 %v908
        %v968 = vpop.xlane.xlu0 %967
        %969 = vadd.xlane.f32.xlu0 %v909
        %v970 = vpop.xlane.xlu0 %969
        %971 = vadd.xlane.f32.xlu0 %v910
        %v972 = vpop.xlane.xlu0 %971
        %973 = vadd.xlane.f32.xlu0 %v911
        %v974 = vpop.xlane.xlu0 %973
        %975 = vadd.xlane.f32.xlu0 %v912
        %v976 = vpop.xlane.xlu0 %975
        %v977 = vsub.f32 %v814, %v914
        %v978 = vsub.f32 %v816, %v916
        %v979 = vsub.f32 %v818, %v918
        %v980 = vsub.f32 %v820, %v920
        %v981 = vsub.f32 %v822, %v922
        %v982 = vsub.f32 %v824, %v924
        %v983 = vsub.f32 %v826, %v926
        %v984 = vsub.f32 %v828, %v928
        %v985 = vsub.f32 %v830, %v930
        %v986 = vsub.f32 %v832, %v932
        %v987 = vsub.f32 %v834, %v934
        %v988 = vsub.f32 %v836, %v936
        %v989 = vsub.f32 %v838, %v938
        %v990 = vsub.f32 %v840, %v940
        %v991 = vsub.f32 %v842, %v942
        %v992 = vsub.f32 %v844, %v944
        %v993 = vsub.f32 %v846, %v946
        %v994 = vsub.f32 %v848, %v948
        %v995 = vsub.f32 %v850, %v950
        %v996 = vsub.f32 %v852, %v952
        %v997 = vsub.f32 %v854, %v954
        %v998 = vsub.f32 %v856, %v956
        %v999 = vsub.f32 %v858, %v958
        %v1000 = vsub.f32 %v860, %v960
        %v1001 = vsub.f32 %v862, %v962
        %v1002 = vsub.f32 %v864, %v964
        %v1003 = vsub.f32 %v866, %v966
        %v1004 = vsub.f32 %v868, %v968
        %v1005 = vsub.f32 %v870, %v970
        %v1006 = vsub.f32 %v872, %v972
        %v1007 = vsub.f32 %v874, %v974
        %v1008 = vsub.f32 %v876, %v976
        %vm1009 = vcmask 7168
        %v1010 = vsel %vm1009, %v914, %v977
        %v1011 = vsel %vm1009, %v916, %v978
        %v1012 = vsel %vm1009, %v918, %v979
        %v1013 = vsel %vm1009, %v920, %v980
        %v1014 = vsel %vm1009, %v922, %v981
        %v1015 = vsel %vm1009, %v924, %v982
        %v1016 = vsel %vm1009, %v926, %v983
        %v1017 = vsel %vm1009, %v928, %v984
        %v1018 = vsel %vm1009, %v930, %v985
        %v1019 = vsel %vm1009, %v932, %v986
        %v1020 = vsel %vm1009, %v934, %v987
        %v1021 = vsel %vm1009, %v936, %v988
        %v1022 = vsel %vm1009, %v938, %v989
        %v1023 = vsel %vm1009, %v940, %v990
        %v1024 = vsel %vm1009, %v942, %v991
        %v1025 = vsel %vm1009, %v944, %v992
        %v1026 = vsel %vm1009, %v946, %v993
        %v1027 = vsel %vm1009, %v948, %v994
        %v1028 = vsel %vm1009, %v950, %v995
        %v1029 = vsel %vm1009, %v952, %v996
        %v1030 = vsel %vm1009, %v954, %v997
        %v1031 = vsel %vm1009, %v956, %v998
        %v1032 = vsel %vm1009, %v958, %v999
        %v1033 = vsel %vm1009, %v960, %v1000
        %v1034 = vsel %vm1009, %v962, %v1001
        %v1035 = vsel %vm1009, %v964, %v1002
        %v1036 = vsel %vm1009, %v966, %v1003
        %v1037 = vsel %vm1009, %v968, %v1004
        %v1038 = vsel %vm1009, %v970, %v1005
        %v1039 = vsel %vm1009, %v972, %v1006
        %v1040 = vsel %vm1009, %v974, %v1007
        %v1041 = vsel %vm1009, %v976, %v1008
        %vm1042 = vcmask 15360
        %1043 = vst.msk [vmem:[%s321] sm:$0xff] %vm1042, %v1010
        %1044 = vst.msk [vmem:[%s321 + $0x8] sm:$0xff] %vm1042, %v1011
        %1045 = vst.msk [vmem:[%s321 + $0x10] sm:$0xff] %vm1042, %v1012
        %1046 = vst.msk [vmem:[%s321 + $0x18] sm:$0xff] %vm1042, %v1013
        %1047 = vst.msk [vmem:[%s321 + $0x20] sm:$0xff] %vm1042, %v1014
        %1048 = vst.msk [vmem:[%s321 + $0x28] sm:$0xff] %vm1042, %v1015
        %1049 = vst.msk [vmem:[%s321 + $0x30] sm:$0xff] %vm1042, %v1016
        %1050 = vst.msk [vmem:[%s321 + $0x38] sm:$0xff] %vm1042, %v1017
        %1051 = vst.msk [vmem:[%s321 + $0x40] sm:$0xff] %vm1042, %v1018
        %1052 = vst.msk [vmem:[%s321 + $0x48] sm:$0xff] %vm1042, %v1019
        %1053 = vst.msk [vmem:[%s321 + $0x50] sm:$0xff] %vm1042, %v1020
        %1054 = vst.msk [vmem:[%s321 + $0x58] sm:$0xff] %vm1042, %v1021
        %1055 = vst.msk [vmem:[%s321 + $0x60] sm:$0xff] %vm1042, %v1022
        %1056 = vst.msk [vmem:[%s321 + $0x68] sm:$0xff] %vm1042, %v1023
        %1057 = vst.msk [vmem:[%s321 + $0x70] sm:$0xff] %vm1042, %v1024
        %1058 = vst.msk [vmem:[%s321 + $0x78] sm:$0xff] %vm1042, %v1025
        %1059 = vst.msk [vmem:[%s321 + $0x80] sm:$0xff] %vm1042, %v1026
        %1060 = vst.msk [vmem:[%s321 + $0x88] sm:$0xff] %vm1042, %v1027
        %1061 = vst.msk [vmem:[%s321 + $0x90] sm:$0xff] %vm1042, %v1028
        %1062 = vst.msk [vmem:[%s321 + $0x98] sm:$0xff] %vm1042, %v1029
        %1063 = vst.msk [vmem:[%s321 + $0xa0] sm:$0xff] %vm1042, %v1030
        %1064 = vst.msk [vmem:[%s321 + $0xa8] sm:$0xff] %vm1042, %v1031
        %1065 = vst.msk [vmem:[%s321 + $0xb0] sm:$0xff] %vm1042, %v1032
        %1066 = vst.msk [vmem:[%s321 + $0xb8] sm:$0xff] %vm1042, %v1033
        %1067 = vst.msk [vmem:[%s321 + $0xc0] sm:$0xff] %vm1042, %v1034
        %1068 = vst.msk [vmem:[%s321 + $0xc8] sm:$0xff] %vm1042, %v1035
        %1069 = vst.msk [vmem:[%s321 + $0xd0] sm:$0xff] %vm1042, %v1036
        %1070 = vst.msk [vmem:[%s321 + $0xd8] sm:$0xff] %vm1042, %v1037
        %1071 = vst.msk [vmem:[%s321 + $0xe0] sm:$0xff] %vm1042, %v1038
        %1072 = vst.msk [vmem:[%s321 + $0xe8] sm:$0xff] %vm1042, %v1039
        %1073 = vst.msk [vmem:[%s321 + $0xf0] sm:$0xff] %vm1042, %v1040
        %1074 = vst.msk [vmem:[%s321 + $0xf8] sm:$0xff] %vm1042, %v1041
        %s1075 = smul.u32 32, %s26
        %p1076 = scmp.lt.s32.totalorder %s25, 15
        %s1077 = scalar_select %p1076, %s25, 15
        %p1078 = scmp.lt.s32.totalorder %s1075, 31
        %s1079 = scalar_select %p1078, %s1075, 31
        %s1080 = smul.addr %s1077, 32
        %s1081 = sadd.s32 %s1079, %s1080
        %s1082 = smul.addr %s1081, 8
        %s1083 = scalar_lea.vmem %s5, %s1082
        // Predicated region
        $region72: #{hash_grid_encode.1} parent=39 // pred_check
          %p1084 = pneg %p168
        $region73: #{hash_grid_encode.1} parent=39 // pred_check_branch
          %1086 = sbr.rel (%p1084) target = $region75
        $region74: #{hash_grid_encode.1} parent=39 // pred_region
          %s1087 = smul.u32 32, %s26
        $region75: #{hash_grid_encode.1} parent=39 // pred_fallthru
          _
      $region40: #{hash_grid_encode.1} parent=5 // pred_fallthru
        _
      %p1088 = scmp.le.s32.totalorder 2, %s16
      // Predicated region
      $region76: #{hash_grid_encode.1} parent=5 // pred_check
        %p1089 = pneg %p1088
      $region77: #{hash_grid_encode.1} parent=5 // pred_check_branch
        %1091 = sbr.rel (%p1089) target = $region79
      $region78: #{hash_grid_encode.1} parent=5 // pred_region
        %s1092 = ssub.s32 %s16, 2
        // Predicated region
        $region80: #{hash_grid_encode.1} parent=78 // pred_check
          %p1093 = pneg %p174
        $region81: #{hash_grid_encode.1} parent=78 // pred_check_branch
          %1095 = sbr.rel (%p1093) target = $region83
        $region82: #{hash_grid_encode.1} parent=78 // pred_region
          %s1096 = smul.u32 32, %s28
          %p1097 = scmp.lt.s32.totalorder %s27, 15
          %s1098 = scalar_select %p1097, %s27, 15
          %p1099 = scmp.lt.s32.totalorder %s1096, 31
          %s1100 = scalar_select %p1099, %s1096, 31
          %s1101 = smul.addr %s1098, 32
          %s1102 = sadd.s32 %s1100, %s1101
          %s1103 = smul.addr %s1102, 8
          %s1104 = scalar_lea.vmem %s5, %s1103
        $region83: #{hash_grid_encode.1} parent=78 // pred_fallthru
          _
      $region79: #{hash_grid_encode.1} parent=5 // pred_fallthru
        _
    $region6: #{hash_grid_encode.1} parent=1 // loop_footer
      %s20 = sadd.s32 1, %s16
    $region7: #{hash_grid_encode.1} parent=1 // loop_footer_branch
      %15 = sbr.rel target = $region3
    $region8: #{hash_grid_encode.1} parent=1 // loop_exit
      _
    %1105 = vsyncpa [#allocation9], 1
    %s1106 = scalar_lea.sflag [#allocation9], 1
    %1107 = vsyncpa %s1106, 1
    %1108 = vsyncpa [#allocation10], 1
    %s1109 = scalar_lea.sflag [#allocation10], 1
    %1110 = vsyncpa %s1109, 1
    %1111 = vsyncpa [#allocation12], 1
  %1112 = vsyncmov [#allocation7]
  %s1113 = vpop.sfrf %1112
  %p1114 = scmp.eq.s32.totalorder %s1113, 0
  %p1115 = pneg %p1114
  %1117 = shalt.err (%p1115)
  %s1118 = scalar_lea.sflag [#allocation7], 1
  %1119 = vsyncmov %s1118
  %s1120 = vpop.sfrf %1119
  %p1121 = scmp.eq.s32.totalorder %s1120, 0
  %p1122 = pneg %p1121
  %1124 = shalt.err (%p1122)

</llo_original>
